<compile_context>
chip_gen: v6e
topology: v6e:2x2x1
jax: 0.10.0
libtpu: 0.0.40
codegen_flags: <defaults>
</compile_context>

<pallas_src>
import functools

import jax
import jax.numpy as jnp
from jax.experimental import pallas as pl
from jax.experimental.pallas import tpu as pltpu

# Layer sizes from the module __init__.
INPUT_SIZE = 784
HIDDEN = (512, 256, 128, 64, 32)
NUM_CLASSES = 10

OUT_PAD = 128          # lane-dense logits width (10 padded to 128, sliced in wrapper)
TILE_B_MAX = 1024      # batch tile; working set ~10-13 MB << 32 MiB scoped VMEM

_INV_SQRT2 = 0.7071067811865475
_SQRT_2_OVER_PI = 0.7978845608028654
_GELU_C = 0.044715


def _gelu_erf(x):
    # Exact erf GELU == torch.nn.functional.gelu default.
    return 0.5 * x * (1.0 + jax.lax.erf(x * jnp.float32(_INV_SQRT2)))


def _gelu_tanh(x):
    # tanh-approximate GELU: the transcendental goes to the EUP slot instead of
    # an erf polynomial on the VALU (v6e/v7x were VALU-bound with exact erf).
    inner = jnp.float32(_SQRT_2_OVER_PI) * (x + jnp.float32(_GELU_C) * (x * x * x))
    return 0.5 * x * (1.0 + jnp.tanh(inner))


def _use_exact_gelu():
    # Keep exact-erf GELU on v5e and older (MXU-bound; approximation buys
    # nothing); use tanh-approx on v6e/v7x where the erf VALU polynomial
    # dominates the bundle-limited critical path.
    kind = jax.devices()[0].device_kind.lower()
    return any(g in kind for g in ("v2", "v3", "v4", "v5"))


def mlp_kernel(x_ref,
               w1, b1, w2, b2, w3, b3, w4, b4, w5, b5, w6, b6,
               out_ref, *, exact_gelu):
    gelu = _gelu_erf if exact_gelu else _gelu_tanh

    def linear(h_bf16, w_ref, b_ref):
        # bf16 MXU operands, f32 accumulation; bias stays f32.
        return jnp.dot(h_bf16, w_ref[...],
                       preferred_element_type=jnp.float32) + b_ref[...]

    # x streamed from HBM as f32 (no extra wrapper pad/cast pass); cast to bf16
    # once in VMEM for the MXU.
    h = x_ref[...].astype(jnp.bfloat16)
    # fc1..fc5: linear -> GELU (dropout = identity in eval mode)
    h = gelu(linear(h, w1, b1)).astype(jnp.bfloat16)
    h = gelu(linear(h, w2, b2)).astype(jnp.bfloat16)
    h = gelu(linear(h, w3, b3)).astype(jnp.bfloat16)
    h = gelu(linear(h, w4, b4)).astype(jnp.bfloat16)
    h = gelu(linear(h, w5, b5)).astype(jnp.bfloat16)
    # fc6: final linear, no activation (out columns 10..127 are zero-padded)
    out_ref[...] = linear(h, w6, b6).astype(out_ref.dtype)


def _round_up(n, m):
    return ((n + m - 1) // m) * m


def _pick_tile_b(batch):
    """Largest tile <= TILE_B_MAX, preferring >=2 grid steps when the batch
    allows so both v7x TensorCores get work; multiples of 16 sublanes."""
    if batch <= 16:
        return batch                      # single full-array block (valid BlockSpec)
    if batch <= 2 * TILE_B_MAX:
        half = _round_up(pl.cdiv(batch, 2), 16)
        return min(half, TILE_B_MAX)
    return TILE_B_MAX


@functools.partial(jax.jit, static_argnames=("exact_gelu",))
def _forward(x, params, *, exact_gelu):
    """x: (B, 1, 28, 28) float32.  params: list of (W_t (in,out), b (1,out)) f32."""
    batch = x.shape[0]
    x2d = x.reshape(batch, -1).astype(jnp.float32)   # same as x.view(x.size(0), -1)
    assert x2d.shape[1] == INPUT_SIZE

    tile_b = _pick_tile_b(batch)
    grid = (pl.cdiv(batch, tile_b),)

    flat_args = [x2d]
    in_specs = [pl.BlockSpec((tile_b, INPUT_SIZE), lambda i: (i, 0))]

    n_layers = len(params)
    for idx, (w_t, b_row) in enumerate(params):
        if idx == n_layers - 1:
            # Lane-pad the final layer 10 -> 128 output columns.
            w_t = jnp.pad(w_t, ((0, 0), (0, OUT_PAD - w_t.shape[1])))
            b_row = jnp.pad(b_row, ((0, 0), (0, OUT_PAD - b_row.shape[1])))
        flat_args += [w_t.astype(jnp.bfloat16), b_row.astype(jnp.float32)]
        # Constant index_map -> weights/biases fetched once, kept VMEM-resident.
        in_specs += [pl.BlockSpec(w_t.shape, lambda i: (0, 0)),
                     pl.BlockSpec(b_row.shape, lambda i: (0, 0))]

    out = pl.pallas_call(
        functools.partial(mlp_kernel, exact_gelu=exact_gelu),
        out_shape=jax.ShapeDtypeStruct((batch, OUT_PAD), jnp.float32),
        grid=grid,
        in_specs=in_specs,
        out_specs=pl.BlockSpec((tile_b, OUT_PAD), lambda i: (i, 0)),
        compiler_params=pltpu.CompilerParams(
            dimension_semantics=("parallel",)),
    )(*flat_args)

    return out[:, :NUM_CLASSES]


def standard_mlp_five_layer(x, params):
    return _forward(x, params, exact_gelu=_use_exact_gelu())


def init_params(key):
    """Deterministic init mimicking nn.Linear's uniform(-1/sqrt(fan_in), +)."""
    sizes = (INPUT_SIZE,) + HIDDEN + (NUM_CLASSES,)
    params = []
    for i in range(len(sizes) - 1):
        fan_in, fan_out = sizes[i], sizes[i + 1]
        key, kw, kb = jax.random.split(key, 3)
        bound = 1.0 / jnp.sqrt(jnp.float32(fan_in))
        # PyTorch stores weight as (out, in); we keep the transposed (in, out).
        w_t = jax.random.uniform(kw, (fan_in, fan_out), jnp.float32, -bound, bound)
        b_row = jax.random.uniform(kb, (1, fan_out), jnp.float32, -bound, bound)
        params.append((w_t, b_row))
    return params


if __name__ == "__main__":
    key = jax.random.PRNGKey(0)
    key, kx = jax.random.split(key)

    # Small batch, MNIST-like NCHW input consistent with input_size=784.
    x = jax.random.normal(kx, (2, 1, 28, 28), jnp.float32)
    params = init_params(key)

    out = standard_mlp_five_layer(x, params)
    jax.block_until_ready(out)

    # Pure-JAX reference with the same bf16-operand / f32-accumulate math and
    # the same (generation-gated) GELU variant as the kernel.
    gelu_ref = _gelu_erf if _use_exact_gelu() else _gelu_tanh

    def ref(x, params):
        h = x.reshape(x.shape[0], -1)
        n = len(params)
        for i, (w_t, b_row) in enumerate(params):
            y = jnp.dot(h.astype(jnp.bfloat16), w_t.astype(jnp.bfloat16),
                        preferred_element_type=jnp.float32) + b_row
            if i < n - 1:
                y = gelu_ref(y)
            h = y
        return h

    ref_out = ref(x, params)
    assert out.shape == (2, NUM_CLASSES)
    assert jnp.allclose(out, ref_out, atol=2e-3, rtol=2e-3), (
        float(jnp.max(jnp.abs(out - ref_out))))
    print("KERNEL_OK")
</pallas_src>

<mosaic_0001>
module attributes {stable_mosaic.version = 11 : i64} {
  func.func @mlp_kernel(%arg0: i32, %arg1: memref<2x784xf32, #tpu.memory_space<vmem>>, %arg2: memref<784x512xbf16, #tpu.memory_space<vmem>>, %arg3: memref<1x512xf32, #tpu.memory_space<vmem>>, %arg4: memref<512x256xbf16, #tpu.memory_space<vmem>>, %arg5: memref<1x256xf32, #tpu.memory_space<vmem>>, %arg6: memref<256x128xbf16, #tpu.memory_space<vmem>>, %arg7: memref<1x128xf32, #tpu.memory_space<vmem>>, %arg8: memref<128x64xbf16, #tpu.memory_space<vmem>>, %arg9: memref<1x64xf32, #tpu.memory_space<vmem>>, %arg10: memref<64x32xbf16, #tpu.memory_space<vmem>>, %arg11: memref<1x32xf32, #tpu.memory_space<vmem>>, %arg12: memref<32x128xbf16, #tpu.memory_space<vmem>>, %arg13: memref<1x128xf32, #tpu.memory_space<vmem>>, %arg14: memref<2x128xf32, #tpu.memory_space<vmem>>) attributes {dimension_semantics = [#tpu.dimension_semantics<parallel>], iteration_bounds = array<i64: 1>, scalar_prefetch = 0 : i64, scratch_operands = 0 : i64, tpu.core_type = #tpu.core_type<tc>, window_params = [{transform_indices = @transform_0, window_bounds = array<i64: 2, 784>}, {pipeline_mode = #tpu.pipeline_mode<synchronous>, transform_indices = @transform_1, window_bounds = array<i64: 784, 512>}, {pipeline_mode = #tpu.pipeline_mode<synchronous>, transform_indices = @transform_2, window_bounds = array<i64: 1, 512>}, {pipeline_mode = #tpu.pipeline_mode<synchronous>, transform_indices = @transform_3, window_bounds = array<i64: 512, 256>}, {pipeline_mode = #tpu.pipeline_mode<synchronous>, transform_indices = @transform_4, window_bounds = array<i64: 1, 256>}, {pipeline_mode = #tpu.pipeline_mode<synchronous>, transform_indices = @transform_5, window_bounds = array<i64: 256, 128>}, {pipeline_mode = #tpu.pipeline_mode<synchronous>, transform_indices = @transform_6, window_bounds = array<i64: 1, 128>}, {pipeline_mode = #tpu.pipeline_mode<synchronous>, transform_indices = @transform_7, window_bounds = array<i64: 128, 64>}, {pipeline_mode = #tpu.pipeline_mode<synchronous>, transform_indices = @transform_8, window_bounds = array<i64: 1, 64>}, {pipeline_mode = #tpu.pipeline_mode<synchronous>, transform_indices = @transform_9, window_bounds = array<i64: 64, 32>}, {pipeline_mode = #tpu.pipeline_mode<synchronous>, transform_indices = @transform_10, window_bounds = array<i64: 1, 32>}, {pipeline_mode = #tpu.pipeline_mode<synchronous>, transform_indices = @transform_11, window_bounds = array<i64: 32, 128>}, {pipeline_mode = #tpu.pipeline_mode<synchronous>, transform_indices = @transform_12, window_bounds = array<i64: 1, 128>}, {transform_indices = @transform_13, window_bounds = array<i64: 2, 128>}]} {
    %c0 = arith.constant 0 : index
    %c0_0 = arith.constant 0 : index
    %0 = vector.load %arg1[%c0, %c0_0] : memref<2x784xf32, #tpu.memory_space<vmem>>, vector<2x784xf32>
    %1 = arith.truncf %0 : vector<2x784xf32> to vector<2x784xbf16>
    %c0_1 = arith.constant 0 : index
    %c0_2 = arith.constant 0 : index
    %2 = vector.load %arg2[%c0_1, %c0_2] : memref<784x512xbf16, #tpu.memory_space<vmem>>, vector<784x512xbf16>
    %cst = arith.constant dense<0.000000e+00> : vector<2x512xf32>
    %3 = tpu.matmul %1, %2, %cst {dimension_numbers = #tpu.dot_dimension_numbers<[1], [0], [0], [1], [0, 0, 1, 1], [], []>} : vector<2x784xbf16>, vector<784x512xbf16>, vector<2x512xf32> -> vector<2x512xf32>
    %c0_3 = arith.constant 0 : index
    %c0_4 = arith.constant 0 : index
    %4 = vector.load %arg3[%c0_3, %c0_4] : memref<1x512xf32, #tpu.memory_space<vmem>>, vector<1x512xf32>
    %5 = vector.broadcast %4 : vector<1x512xf32> to vector<2x512xf32>
    %6 = arith.addf %3, %5 : vector<2x512xf32>
    %7 = arith.mulf %6, %6 : vector<2x512xf32>
    %8 = arith.mulf %7, %6 : vector<2x512xf32>
    %cst_5 = arith.constant 4.471500e-02 : f32
    %9 = vector.broadcast %cst_5 : f32 to vector<2x512xf32>
    %10 = arith.mulf %9, %8 : vector<2x512xf32>
    %11 = arith.addf %6, %10 : vector<2x512xf32>
    %cst_6 = arith.constant 0.797884583 : f32
    %12 = vector.broadcast %cst_6 : f32 to vector<2x512xf32>
    %13 = arith.mulf %12, %11 : vector<2x512xf32>
    %cst_7 = arith.constant 5.000000e-01 : f32
    %14 = vector.broadcast %cst_7 : f32 to vector<2x512xf32>
    %15 = arith.mulf %14, %6 : vector<2x512xf32>
    %16 = math.tanh %13 : vector<2x512xf32>
    %cst_8 = arith.constant 1.000000e+00 : f32
    %17 = vector.broadcast %cst_8 : f32 to vector<2x512xf32>
    %18 = arith.addf %17, %16 : vector<2x512xf32>
    %19 = arith.mulf %15, %18 : vector<2x512xf32>
    %20 = arith.truncf %19 : vector<2x512xf32> to vector<2x512xbf16>
    %c0_9 = arith.constant 0 : index
    %c0_10 = arith.constant 0 : index
    %21 = vector.load %arg4[%c0_9, %c0_10] : memref<512x256xbf16, #tpu.memory_space<vmem>>, vector<512x256xbf16>
    %cst_11 = arith.constant dense<0.000000e+00> : vector<2x256xf32>
    %22 = tpu.matmul %20, %21, %cst_11 {dimension_numbers = #tpu.dot_dimension_numbers<[1], [0], [0], [1], [0, 0, 1, 1], [], []>} : vector<2x512xbf16>, vector<512x256xbf16>, vector<2x256xf32> -> vector<2x256xf32>
    %c0_12 = arith.constant 0 : index
    %c0_13 = arith.constant 0 : index
    %23 = vector.load %arg5[%c0_12, %c0_13] : memref<1x256xf32, #tpu.memory_space<vmem>>, vector<1x256xf32>
    %24 = vector.broadcast %23 : vector<1x256xf32> to vector<2x256xf32>
    %25 = arith.addf %22, %24 : vector<2x256xf32>
    %26 = arith.mulf %25, %25 : vector<2x256xf32>
    %27 = arith.mulf %26, %25 : vector<2x256xf32>
    %cst_14 = arith.constant 4.471500e-02 : f32
    %28 = vector.broadcast %cst_14 : f32 to vector<2x256xf32>
    %29 = arith.mulf %28, %27 : vector<2x256xf32>
    %30 = arith.addf %25, %29 : vector<2x256xf32>
    %cst_15 = arith.constant 0.797884583 : f32
    %31 = vector.broadcast %cst_15 : f32 to vector<2x256xf32>
    %32 = arith.mulf %31, %30 : vector<2x256xf32>
    %cst_16 = arith.constant 5.000000e-01 : f32
    %33 = vector.broadcast %cst_16 : f32 to vector<2x256xf32>
    %34 = arith.mulf %33, %25 : vector<2x256xf32>
    %35 = math.tanh %32 : vector<2x256xf32>
    %cst_17 = arith.constant 1.000000e+00 : f32
    %36 = vector.broadcast %cst_17 : f32 to vector<2x256xf32>
    %37 = arith.addf %36, %35 : vector<2x256xf32>
    %38 = arith.mulf %34, %37 : vector<2x256xf32>
    %39 = arith.truncf %38 : vector<2x256xf32> to vector<2x256xbf16>
    %c0_18 = arith.constant 0 : index
    %c0_19 = arith.constant 0 : index
    %40 = vector.load %arg6[%c0_18, %c0_19] : memref<256x128xbf16, #tpu.memory_space<vmem>>, vector<256x128xbf16>
    %cst_20 = arith.constant dense<0.000000e+00> : vector<2x128xf32>
    %41 = tpu.matmul %39, %40, %cst_20 {dimension_numbers = #tpu.dot_dimension_numbers<[1], [0], [0], [1], [0, 0, 1, 1], [], []>} : vector<2x256xbf16>, vector<256x128xbf16>, vector<2x128xf32> -> vector<2x128xf32>
    %c0_21 = arith.constant 0 : index
    %c0_22 = arith.constant 0 : index
    %42 = vector.load %arg7[%c0_21, %c0_22] : memref<1x128xf32, #tpu.memory_space<vmem>>, vector<1x128xf32>
    %43 = vector.broadcast %42 : vector<1x128xf32> to vector<2x128xf32>
    %44 = arith.addf %41, %43 : vector<2x128xf32>
    %45 = arith.mulf %44, %44 : vector<2x128xf32>
    %46 = arith.mulf %45, %44 : vector<2x128xf32>
    %cst_23 = arith.constant 4.471500e-02 : f32
    %47 = vector.broadcast %cst_23 : f32 to vector<2x128xf32>
    %48 = arith.mulf %47, %46 : vector<2x128xf32>
    %49 = arith.addf %44, %48 : vector<2x128xf32>
    %cst_24 = arith.constant 0.797884583 : f32
    %50 = vector.broadcast %cst_24 : f32 to vector<2x128xf32>
    %51 = arith.mulf %50, %49 : vector<2x128xf32>
    %cst_25 = arith.constant 5.000000e-01 : f32
    %52 = vector.broadcast %cst_25 : f32 to vector<2x128xf32>
    %53 = arith.mulf %52, %44 : vector<2x128xf32>
    %54 = math.tanh %51 : vector<2x128xf32>
    %cst_26 = arith.constant 1.000000e+00 : f32
    %55 = vector.broadcast %cst_26 : f32 to vector<2x128xf32>
    %56 = arith.addf %55, %54 : vector<2x128xf32>
    %57 = arith.mulf %53, %56 : vector<2x128xf32>
    %58 = arith.truncf %57 : vector<2x128xf32> to vector<2x128xbf16>
    %c0_27 = arith.constant 0 : index
    %c0_28 = arith.constant 0 : index
    %59 = vector.load %arg8[%c0_27, %c0_28] : memref<128x64xbf16, #tpu.memory_space<vmem>>, vector<128x64xbf16>
    %cst_29 = arith.constant dense<0.000000e+00> : vector<2x64xf32>
    %60 = tpu.matmul %58, %59, %cst_29 {dimension_numbers = #tpu.dot_dimension_numbers<[1], [0], [0], [1], [0, 0, 1, 1], [], []>} : vector<2x128xbf16>, vector<128x64xbf16>, vector<2x64xf32> -> vector<2x64xf32>
    %c0_30 = arith.constant 0 : index
    %c0_31 = arith.constant 0 : index
    %61 = vector.load %arg9[%c0_30, %c0_31] : memref<1x64xf32, #tpu.memory_space<vmem>>, vector<1x64xf32>
    %62 = vector.broadcast %61 : vector<1x64xf32> to vector<2x64xf32>
    %63 = arith.addf %60, %62 : vector<2x64xf32>
    %64 = arith.mulf %63, %63 : vector<2x64xf32>
    %65 = arith.mulf %64, %63 : vector<2x64xf32>
    %cst_32 = arith.constant 4.471500e-02 : f32
    %66 = vector.broadcast %cst_32 : f32 to vector<2x64xf32>
    %67 = arith.mulf %66, %65 : vector<2x64xf32>
    %68 = arith.addf %63, %67 : vector<2x64xf32>
    %cst_33 = arith.constant 0.797884583 : f32
    %69 = vector.broadcast %cst_33 : f32 to vector<2x64xf32>
    %70 = arith.mulf %69, %68 : vector<2x64xf32>
    %cst_34 = arith.constant 5.000000e-01 : f32
    %71 = vector.broadcast %cst_34 : f32 to vector<2x64xf32>
    %72 = arith.mulf %71, %63 : vector<2x64xf32>
    %73 = math.tanh %70 : vector<2x64xf32>
    %cst_35 = arith.constant 1.000000e+00 : f32
    %74 = vector.broadcast %cst_35 : f32 to vector<2x64xf32>
    %75 = arith.addf %74, %73 : vector<2x64xf32>
    %76 = arith.mulf %72, %75 : vector<2x64xf32>
    %77 = arith.truncf %76 : vector<2x64xf32> to vector<2x64xbf16>
    %c0_36 = arith.constant 0 : index
    %c0_37 = arith.constant 0 : index
    %78 = vector.load %arg10[%c0_36, %c0_37] : memref<64x32xbf16, #tpu.memory_space<vmem>>, vector<64x32xbf16>
    %cst_38 = arith.constant dense<0.000000e+00> : vector<2x32xf32>
    %79 = tpu.matmul %77, %78, %cst_38 {dimension_numbers = #tpu.dot_dimension_numbers<[1], [0], [0], [1], [0, 0, 1, 1], [], []>} : vector<2x64xbf16>, vector<64x32xbf16>, vector<2x32xf32> -> vector<2x32xf32>
    %c0_39 = arith.constant 0 : index
    %c0_40 = arith.constant 0 : index
    %80 = vector.load %arg11[%c0_39, %c0_40] : memref<1x32xf32, #tpu.memory_space<vmem>>, vector<1x32xf32>
    %81 = vector.broadcast %80 : vector<1x32xf32> to vector<2x32xf32>
    %82 = arith.addf %79, %81 : vector<2x32xf32>
    %83 = arith.mulf %82, %82 : vector<2x32xf32>
    %84 = arith.mulf %83, %82 : vector<2x32xf32>
    %cst_41 = arith.constant 4.471500e-02 : f32
    %85 = vector.broadcast %cst_41 : f32 to vector<2x32xf32>
    %86 = arith.mulf %85, %84 : vector<2x32xf32>
    %87 = arith.addf %82, %86 : vector<2x32xf32>
    %cst_42 = arith.constant 0.797884583 : f32
    %88 = vector.broadcast %cst_42 : f32 to vector<2x32xf32>
    %89 = arith.mulf %88, %87 : vector<2x32xf32>
    %cst_43 = arith.constant 5.000000e-01 : f32
    %90 = vector.broadcast %cst_43 : f32 to vector<2x32xf32>
    %91 = arith.mulf %90, %82 : vector<2x32xf32>
    %92 = math.tanh %89 : vector<2x32xf32>
    %cst_44 = arith.constant 1.000000e+00 : f32
    %93 = vector.broadcast %cst_44 : f32 to vector<2x32xf32>
    %94 = arith.addf %93, %92 : vector<2x32xf32>
    %95 = arith.mulf %91, %94 : vector<2x32xf32>
    %96 = arith.truncf %95 : vector<2x32xf32> to vector<2x32xbf16>
    %c0_45 = arith.constant 0 : index
    %c0_46 = arith.constant 0 : index
    %97 = vector.load %arg12[%c0_45, %c0_46] : memref<32x128xbf16, #tpu.memory_space<vmem>>, vector<32x128xbf16>
    %cst_47 = arith.constant dense<0.000000e+00> : vector<2x128xf32>
    %98 = tpu.matmul %96, %97, %cst_47 {dimension_numbers = #tpu.dot_dimension_numbers<[1], [0], [0], [1], [0, 0, 1, 1], [], []>} : vector<2x32xbf16>, vector<32x128xbf16>, vector<2x128xf32> -> vector<2x128xf32>
    %c0_48 = arith.constant 0 : index
    %c0_49 = arith.constant 0 : index
    %99 = vector.load %arg13[%c0_48, %c0_49] : memref<1x128xf32, #tpu.memory_space<vmem>>, vector<1x128xf32>
    %100 = vector.broadcast %99 : vector<1x128xf32> to vector<2x128xf32>
    %101 = arith.addf %98, %100 : vector<2x128xf32>
    %c0_50 = arith.constant 0 : index
    %c0_51 = arith.constant 0 : index
    %102 = vector.load %arg14[%c0_50, %c0_51] : memref<2x128xf32, #tpu.memory_space<vmem>>, vector<2x128xf32>
    tpu.vector_store %arg14[%c0_50, %c0_51], %101 {strides = array<i32>} : memref<2x128xf32, #tpu.memory_space<vmem>>, vector<2x128xf32>,
    return
  }
  func.func @transform_0(%arg0: i32) -> (i32, i32) {
    %c0_i32 = arith.constant 0 : i32
    %c0_i32_0 = arith.constant 0 : i32
    return %arg0, %c0_i32 : i32, i32
  }
  func.func @transform_1(%arg0: i32) -> (i32, i32) {
    %c0_i32 = arith.constant 0 : i32
    %c0_i32_0 = arith.constant 0 : i32
    %c0_i32_1 = arith.constant 0 : i32
    return %c0_i32, %c0_i32_0 : i32, i32
  }
  func.func @transform_2(%arg0: i32) -> (i32, i32) {
    %c0_i32 = arith.constant 0 : i32
    %c0_i32_0 = arith.constant 0 : i32
    %c0_i32_1 = arith.constant 0 : i32
    return %c0_i32, %c0_i32_0 : i32, i32
  }
  func.func @transform_3(%arg0: i32) -> (i32, i32) {
    %c0_i32 = arith.constant 0 : i32
    %c0_i32_0 = arith.constant 0 : i32
    %c0_i32_1 = arith.constant 0 : i32
    return %c0_i32, %c0_i32_0 : i32, i32
  }
  func.func @transform_4(%arg0: i32) -> (i32, i32) {
    %c0_i32 = arith.constant 0 : i32
    %c0_i32_0 = arith.constant 0 : i32
    %c0_i32_1 = arith.constant 0 : i32
    return %c0_i32, %c0_i32_0 : i32, i32
  }
  func.func @transform_5(%arg0: i32) -> (i32, i32) {
    %c0_i32 = arith.constant 0 : i32
    %c0_i32_0 = arith.constant 0 : i32
    %c0_i32_1 = arith.constant 0 : i32
    return %c0_i32, %c0_i32_0 : i32, i32
  }
  func.func @transform_6(%arg0: i32) -> (i32, i32) {
    %c0_i32 = arith.constant 0 : i32
    %c0_i32_0 = arith.constant 0 : i32
    %c0_i32_1 = arith.constant 0 : i32
    return %c0_i32, %c0_i32_0 : i32, i32
  }
  func.func @transform_7(%arg0: i32) -> (i32, i32) {
    %c0_i32 = arith.constant 0 : i32
    %c0_i32_0 = arith.constant 0 : i32
    %c0_i32_1 = arith.constant 0 : i32
    return %c0_i32, %c0_i32_0 : i32, i32
  }
  func.func @transform_8(%arg0: i32) -> (i32, i32) {
    %c0_i32 = arith.constant 0 : i32
    %c0_i32_0 = arith.constant 0 : i32
    %c0_i32_1 = arith.constant 0 : i32
    return %c0_i32, %c0_i32_0 : i32, i32
  }
  func.func @transform_9(%arg0: i32) -> (i32, i32) {
    %c0_i32 = arith.constant 0 : i32
    %c0_i32_0 = arith.constant 0 : i32
    %c0_i32_1 = arith.constant 0 : i32
    return %c0_i32, %c0_i32_0 : i32, i32
  }
  func.func @transform_10(%arg0: i32) -> (i32, i32) {
    %c0_i32 = arith.constant 0 : i32
    %c0_i32_0 = arith.constant 0 : i32
    %c0_i32_1 = arith.constant 0 : i32
    return %c0_i32, %c0_i32_0 : i32, i32
  }
  func.func @transform_11(%arg0: i32) -> (i32, i32) {
    %c0_i32 = arith.constant 0 : i32
    %c0_i32_0 = arith.constant 0 : i32
    %c0_i32_1 = arith.constant 0 : i32
    return %c0_i32, %c0_i32_0 : i32, i32
  }
  func.func @transform_12(%arg0: i32) -> (i32, i32) {
    %c0_i32 = arith.constant 0 : i32
    %c0_i32_0 = arith.constant 0 : i32
    %c0_i32_1 = arith.constant 0 : i32
    return %c0_i32, %c0_i32_0 : i32, i32
  }
  func.func @transform_13(%arg0: i32) -> (i32, i32) {
    %c0_i32 = arith.constant 0 : i32
    %c0_i32_0 = arith.constant 0 : i32
    return %arg0, %c0_i32 : i32, i32
  }
}

</mosaic_0001>

<llo_original>
// kernel: _forward.1
$region0: #{_forward.1}
  #allocation0 [shape = 'u32[]', space=smem, size = 0x4, offset = 0x4, fixed_abs, tag = 'smem constant byte address 0x4 - core index']
  #allocation1 [shape = 'u32[144,128]{1,0:T(1,128)}', space=vmem, size = 0x12000, scoped, tag = 'internal scratch']
  %s0 = inlined_call_operand.vmem [shape: f32[2,784], index: 0, kind: input, shape index: {}]
  %s1 = inlined_call_operand.vmem [shape: bf16[784,512], index: 1, kind: input, shape index: {}]
  %s2 = inlined_call_operand.vmem [shape: f32[1,512], index: 2, kind: input, shape index: {}]
  %s3 = inlined_call_operand.vmem [shape: bf16[512,256], index: 3, kind: input, shape index: {}]
  %s4 = inlined_call_operand.vmem [shape: f32[1,256], index: 4, kind: input, shape index: {}]
  %s5 = inlined_call_operand.vmem [shape: bf16[256,128], index: 5, kind: input, shape index: {}]
  %s6 = inlined_call_operand.vmem [shape: f32[1,128], index: 6, kind: input, shape index: {}]
  %s7 = inlined_call_operand.vmem [shape: bf16[128,64], index: 7, kind: input, shape index: {}]
  %s8 = inlined_call_operand.vmem [shape: f32[1,64], index: 8, kind: input, shape index: {}]
  %s9 = inlined_call_operand.vmem [shape: bf16[64,32], index: 9, kind: input, shape index: {}]
  %s10 = inlined_call_operand.vmem [shape: f32[1,32], index: 10, kind: input, shape index: {}]
  %s11 = inlined_call_operand.vmem [shape: bf16[32,128], index: 11, kind: input, shape index: {}]
  %s12 = inlined_call_operand.vmem [shape: f32[1,128], index: 12, kind: input, shape index: {}]
  %s13 = inlined_call_operand.hbm [shape: f32[2,128], index: 13, kind: output, shape index: {}]
  %s14 = sld [smem:[#allocation0]]
  $region62: #{_forward.1} parent=0
    _
  %s16 = ssub.s32 1, %s14
  %s17 = scalar_select 0, %s16, %s14
  $region1: #{_forward.1} parent=0
    #allocation2 [shape = 'u8[1024]{0}', space=vmem, size = 0x400, scoped, tag = 'output window, operand 0, single buffered']
    #allocation3 [shape = 's32[1]{0}', space=sflag, size = 0x4, scoped, tag = 'scoped memory for _forward.1']
    %18 = vsyncpa [#allocation3], 0
    // Predicated region
    $region2: #{_forward.1} parent=1 // pred_check
      _
    $region3: #{_forward.1} parent=1 // pred_check_branch
      %20 = sbr.rel (0) target = $region5
    $region4: #{_forward.1} parent=1 // pred_region
      _
    $region5: #{_forward.1} parent=1 // pred_fallthru
      _
    // Predicated region
    $region6: #{_forward.1} parent=1 // pred_check
      _
    $region7: #{_forward.1} parent=1 // pred_check_branch
      %22 = sbr.rel (0) target = $region9
    $region8: #{_forward.1} parent=1 // pred_region
      _
    $region9: #{_forward.1} parent=1 // pred_fallthru
      _
    // Predicated region
    $region10: #{_forward.1} parent=1 // pred_check
      _
    $region11: #{_forward.1} parent=1 // pred_check_branch
      %24 = sbr.rel (0) target = $region13
    $region12: #{_forward.1} parent=1 // pred_region
      _
    $region13: #{_forward.1} parent=1 // pred_fallthru
      _
    // Predicated region
    $region14: #{_forward.1} parent=1 // pred_check
      _
    $region15: #{_forward.1} parent=1 // pred_check_branch
      %26 = sbr.rel (0) target = $region17
    $region16: #{_forward.1} parent=1 // pred_region
      _
    $region17: #{_forward.1} parent=1 // pred_fallthru
      _
    // Predicated region
    $region18: #{_forward.1} parent=1 // pred_check
      _
    $region19: #{_forward.1} parent=1 // pred_check_branch
      %28 = sbr.rel (0) target = $region21
    $region20: #{_forward.1} parent=1 // pred_region
      _
    $region21: #{_forward.1} parent=1 // pred_fallthru
      _
    // Predicated region
    $region22: #{_forward.1} parent=1 // pred_check
      _
    $region23: #{_forward.1} parent=1 // pred_check_branch
      %30 = sbr.rel (0) target = $region25
    $region24: #{_forward.1} parent=1 // pred_region
      _
    $region25: #{_forward.1} parent=1 // pred_fallthru
      _
    // Predicated region
    $region26: #{_forward.1} parent=1 // pred_check
      _
    $region27: #{_forward.1} parent=1 // pred_check_branch
      %32 = sbr.rel (0) target = $region29
    $region28: #{_forward.1} parent=1 // pred_region
      _
    $region29: #{_forward.1} parent=1 // pred_fallthru
      _
    // Predicated region
    $region30: #{_forward.1} parent=1 // pred_check
      _
    $region31: #{_forward.1} parent=1 // pred_check_branch
      %34 = sbr.rel (0) target = $region33
    $region32: #{_forward.1} parent=1 // pred_region
      _
    $region33: #{_forward.1} parent=1 // pred_fallthru
      _
    // Predicated region
    $region34: #{_forward.1} parent=1 // pred_check
      _
    $region35: #{_forward.1} parent=1 // pred_check_branch
      %36 = sbr.rel (0) target = $region37
    $region36: #{_forward.1} parent=1 // pred_region
      _
    $region37: #{_forward.1} parent=1 // pred_fallthru
      _
    // Predicated region
    $region38: #{_forward.1} parent=1 // pred_check
      _
    $region39: #{_forward.1} parent=1 // pred_check_branch
      %38 = sbr.rel (0) target = $region41
    $region40: #{_forward.1} parent=1 // pred_region
      _
    $region41: #{_forward.1} parent=1 // pred_fallthru
      _
    // Predicated region
    $region42: #{_forward.1} parent=1 // pred_check
      _
    $region43: #{_forward.1} parent=1 // pred_check_branch
      %40 = sbr.rel (0) target = $region45
    $region44: #{_forward.1} parent=1 // pred_region
      _
    $region45: #{_forward.1} parent=1 // pred_fallthru
      _
    // Predicated region
    $region46: #{_forward.1} parent=1 // pred_check
      _
    $region47: #{_forward.1} parent=1 // pred_check_branch
      %42 = sbr.rel (0) target = $region49
    $region48: #{_forward.1} parent=1 // pred_region
      _
    $region49: #{_forward.1} parent=1 // pred_fallthru
      _
    // Predicated region
    $region50: #{_forward.1} parent=1 // pred_check
      _
    $region51: #{_forward.1} parent=1 // pred_check_branch
      %44 = sbr.rel (0) target = $region53
    $region52: #{_forward.1} parent=1 // pred_region
      _
    $region53: #{_forward.1} parent=1 // pred_fallthru
      _
    %v46 = vld [vmem:[%s0] sm:$0xff]
    %v47 = vld [vmem:[%s0 + $0x8] sm:$0x3f]
    %v50 = vcombine.high %v46, %v46
    %v52 = vunpack.c.l.s4 1983009808
    %v53 = vunpack.c.0.s8 %v52
    %v54 = vlaneseq
    %v55 = vshrl.u32 %v54, 7
    %v56 = vsub.s32 %v53, %v55
    %v57 = vrot.slane %v46, %v56
    %v59 = vunpack.c.l.s4 1983009808
    %v60 = vunpack.c.0.s8 %v59
    %v61 = vlaneseq
    %v62 = vshrl.u32 %v61, 7
    %v63 = vsub.s32 %v60, %v62
    %v64 = vrot.slane %v50, %v63
    %v65 = vcombine.high %v57, %v57
    %v66 = vcombine.high %v64, %v64
    %v67 = vcombine.high %v47, %v47
    %v69 = vunpack.c.l.s4 1983009808
    %v70 = vunpack.c.0.s8 %v69
    %v71 = vlaneseq
    %v72 = vshrl.u32 %v71, 7
    %v73 = vsub.s32 %v70, %v72
    %v74 = vrot.slane %v47, %v73
    %v76 = vunpack.c.l.s4 1983009808
    %v77 = vunpack.c.0.s8 %v76
    %v78 = vlaneseq
    %v79 = vshrl.u32 %v78, 7
    %v80 = vsub.s32 %v77, %v79
    %v81 = vrot.slane %v67, %v80
    %v82 = vcombine.high %v74, %v74
    %v90 = vpack.c.bf16 %v57, %v57
    %v91 = vpack.c.bf16 %v65, %v65
    %v92 = vpack.c.bf16 %v64, %v64
    %v93 = vpack.c.bf16 %v66, %v66
    %v94 = vpack.c.bf16 %v74, %v74
    %v95 = vpack.c.bf16 %v82, %v82
    %v96 = vpack.c.bf16 %v81, %v81
    %v97 = vld [vmem:[%s1] sm:$0xff]
    %v98 = vld [vmem:[%s1 + $0x8] sm:$0xff]
    %v99 = vld [vmem:[%s1 + $0x10] sm:$0xff]
    %v100 = vld [vmem:[%s1 + $0x18] sm:$0xff]
    %v101 = vld [vmem:[%s1 + $0x20] sm:$0xff]
    %v102 = vld [vmem:[%s1 + $0x28] sm:$0xff]
    %v103 = vld [vmem:[%s1 + $0x30] sm:$0xff]
    %v104 = vld [vmem:[%s1 + $0x38] sm:$0xff]
    %v105 = vld [vmem:[%s1 + $0x40] sm:$0xff]
    %v106 = vld [vmem:[%s1 + $0x48] sm:$0xff]
    %v107 = vld [vmem:[%s1 + $0x50] sm:$0xff]
    %v108 = vld [vmem:[%s1 + $0x58] sm:$0xff]
    %v109 = vld [vmem:[%s1 + $0x60] sm:$0xff]
    %v110 = vld [vmem:[%s1 + $0x68] sm:$0xff]
    %v111 = vld [vmem:[%s1 + $0x70] sm:$0xff]
    %v112 = vld [vmem:[%s1 + $0x78] sm:$0xff]
    %v113 = vld [vmem:[%s1 + $0x80] sm:$0xff]
    %v114 = vld [vmem:[%s1 + $0x88] sm:$0xff]
    %v115 = vld [vmem:[%s1 + $0x90] sm:$0xff]
    %v116 = vld [vmem:[%s1 + $0x98] sm:$0xff]
    %v117 = vld [vmem:[%s1 + $0xa0] sm:$0xff]
    %v118 = vld [vmem:[%s1 + $0xa8] sm:$0xff]
    %v119 = vld [vmem:[%s1 + $0xb0] sm:$0xff]
    %v120 = vld [vmem:[%s1 + $0xb8] sm:$0xff]
    %v121 = vld [vmem:[%s1 + $0xc0] sm:$0xff]
    %v122 = vld [vmem:[%s1 + $0xc8] sm:$0xff]
    %v123 = vld [vmem:[%s1 + $0xd0] sm:$0xff]
    %v124 = vld [vmem:[%s1 + $0xd8] sm:$0xff]
    %v125 = vld [vmem:[%s1 + $0xe0] sm:$0xff]
    %v126 = vld [vmem:[%s1 + $0xe8] sm:$0xff]
    %v127 = vld [vmem:[%s1 + $0xf0] sm:$0xff]
    %v128 = vld [vmem:[%s1 + $0xf8] sm:$0xff]
    %v129 = vld [vmem:[%s1 + $0x100] sm:$0xff]
    %v130 = vld [vmem:[%s1 + $0x108] sm:$0xff]
    %v131 = vld [vmem:[%s1 + $0x110] sm:$0xff]
    %v132 = vld [vmem:[%s1 + $0x118] sm:$0xff]
    %v133 = vld [vmem:[%s1 + $0x120] sm:$0xff]
    %v134 = vld [vmem:[%s1 + $0x128] sm:$0xff]
    %v135 = vld [vmem:[%s1 + $0x130] sm:$0xff]
    %v136 = vld [vmem:[%s1 + $0x138] sm:$0xff]
    %v137 = vld [vmem:[%s1 + $0x140] sm:$0xff]
    %v138 = vld [vmem:[%s1 + $0x148] sm:$0xff]
    %v139 = vld [vmem:[%s1 + $0x150] sm:$0xff]
    %v140 = vld [vmem:[%s1 + $0x158] sm:$0xff]
    %v141 = vld [vmem:[%s1 + $0x160] sm:$0xff]
    %v142 = vld [vmem:[%s1 + $0x168] sm:$0xff]
    %v143 = vld [vmem:[%s1 + $0x170] sm:$0xff]
    %v144 = vld [vmem:[%s1 + $0x178] sm:$0xff]
    %v145 = vld [vmem:[%s1 + $0x180] sm:$0xff]
    %v146 = vld [vmem:[%s1 + $0x188] sm:$0xff]
    %v147 = vld [vmem:[%s1 + $0x190] sm:$0xff]
    %v148 = vld [vmem:[%s1 + $0x198] sm:$0xff]
    %v149 = vld [vmem:[%s1 + $0x1a0] sm:$0xff]
    %v150 = vld [vmem:[%s1 + $0x1a8] sm:$0xff]
    %v151 = vld [vmem:[%s1 + $0x1b0] sm:$0xff]
    %v152 = vld [vmem:[%s1 + $0x1b8] sm:$0xff]
    %v153 = vld [vmem:[%s1 + $0x1c0] sm:$0xff]
    %v154 = vld [vmem:[%s1 + $0x1c8] sm:$0xff]
    %v155 = vld [vmem:[%s1 + $0x1d0] sm:$0xff]
    %v156 = vld [vmem:[%s1 + $0x1d8] sm:$0xff]
    %v157 = vld [vmem:[%s1 + $0x1e0] sm:$0xff]
    %v158 = vld [vmem:[%s1 + $0x1e8] sm:$0xff]
    %v159 = vld [vmem:[%s1 + $0x1f0] sm:$0xff]
    %v160 = vld [vmem:[%s1 + $0x1f8] sm:$0xff]
    %v161 = vld [vmem:[%s1 + $0x200] sm:$0xff]
    %v162 = vld [vmem:[%s1 + $0x208] sm:$0xff]
    %v163 = vld [vmem:[%s1 + $0x210] sm:$0xff]
    %v164 = vld [vmem:[%s1 + $0x218] sm:$0xff]
    %v165 = vld [vmem:[%s1 + $0x220] sm:$0xff]
    %v166 = vld [vmem:[%s1 + $0x228] sm:$0xff]
    %v167 = vld [vmem:[%s1 + $0x230] sm:$0xff]
    %v168 = vld [vmem:[%s1 + $0x238] sm:$0xff]
    %v169 = vld [vmem:[%s1 + $0x240] sm:$0xff]
    %v170 = vld [vmem:[%s1 + $0x248] sm:$0xff]
    %v171 = vld [vmem:[%s1 + $0x250] sm:$0xff]
    %v172 = vld [vmem:[%s1 + $0x258] sm:$0xff]
    %v173 = vld [vmem:[%s1 + $0x260] sm:$0xff]
    %v174 = vld [vmem:[%s1 + $0x268] sm:$0xff]
    %v175 = vld [vmem:[%s1 + $0x270] sm:$0xff]
    %v176 = vld [vmem:[%s1 + $0x278] sm:$0xff]
    %v177 = vld [vmem:[%s1 + $0x280] sm:$0xff]
    %v178 = vld [vmem:[%s1 + $0x288] sm:$0xff]
    %v179 = vld [vmem:[%s1 + $0x290] sm:$0xff]
    %v180 = vld [vmem:[%s1 + $0x298] sm:$0xff]
    %v181 = vld [vmem:[%s1 + $0x2a0] sm:$0xff]
    %v182 = vld [vmem:[%s1 + $0x2a8] sm:$0xff]
    %v183 = vld [vmem:[%s1 + $0x2b0] sm:$0xff]
    %v184 = vld [vmem:[%s1 + $0x2b8] sm:$0xff]
    %v185 = vld [vmem:[%s1 + $0x2c0] sm:$0xff]
    %v186 = vld [vmem:[%s1 + $0x2c8] sm:$0xff]
    %v187 = vld [vmem:[%s1 + $0x2d0] sm:$0xff]
    %v188 = vld [vmem:[%s1 + $0x2d8] sm:$0xff]
    %v189 = vld [vmem:[%s1 + $0x2e0] sm:$0xff]
    %v190 = vld [vmem:[%s1 + $0x2e8] sm:$0xff]
    %v191 = vld [vmem:[%s1 + $0x2f0] sm:$0xff]
    %v192 = vld [vmem:[%s1 + $0x2f8] sm:$0xff]
    %v193 = vld [vmem:[%s1 + $0x300] sm:$0xff]
    %v194 = vld [vmem:[%s1 + $0x308] sm:$0xff]
    %v195 = vld [vmem:[%s1 + $0x310] sm:$0xff]
    %v196 = vld [vmem:[%s1 + $0x318] sm:$0xff]
    %v197 = vld [vmem:[%s1 + $0x320] sm:$0xff]
    %v198 = vld [vmem:[%s1 + $0x328] sm:$0xff]
    %v199 = vld [vmem:[%s1 + $0x330] sm:$0xff]
    %v200 = vld [vmem:[%s1 + $0x338] sm:$0xff]
    %v201 = vld [vmem:[%s1 + $0x340] sm:$0xff]
    %v202 = vld [vmem:[%s1 + $0x348] sm:$0xff]
    %v203 = vld [vmem:[%s1 + $0x350] sm:$0xff]
    %v204 = vld [vmem:[%s1 + $0x358] sm:$0xff]
    %v205 = vld [vmem:[%s1 + $0x360] sm:$0xff]
    %v206 = vld [vmem:[%s1 + $0x368] sm:$0xff]
    %v207 = vld [vmem:[%s1 + $0x370] sm:$0xff]
    %v208 = vld [vmem:[%s1 + $0x378] sm:$0xff]
    %v209 = vld [vmem:[%s1 + $0x380] sm:$0xff]
    %v210 = vld [vmem:[%s1 + $0x388] sm:$0xff]
    %v211 = vld [vmem:[%s1 + $0x390] sm:$0xff]
    %v212 = vld [vmem:[%s1 + $0x398] sm:$0xff]
    %v213 = vld [vmem:[%s1 + $0x3a0] sm:$0xff]
    %v214 = vld [vmem:[%s1 + $0x3a8] sm:$0xff]
    %v215 = vld [vmem:[%s1 + $0x3b0] sm:$0xff]
    %v216 = vld [vmem:[%s1 + $0x3b8] sm:$0xff]
    %v217 = vld [vmem:[%s1 + $0x3c0] sm:$0xff]
    %v218 = vld [vmem:[%s1 + $0x3c8] sm:$0xff]
    %v219 = vld [vmem:[%s1 + $0x3d0] sm:$0xff]
    %v220 = vld [vmem:[%s1 + $0x3d8] sm:$0xff]
    %v221 = vld [vmem:[%s1 + $0x3e0] sm:$0xff]
    %v222 = vld [vmem:[%s1 + $0x3e8] sm:$0xff]
    %v223 = vld [vmem:[%s1 + $0x3f0] sm:$0xff]
    %v224 = vld [vmem:[%s1 + $0x3f8] sm:$0xff]
    %v225 = vld [vmem:[%s1 + $0x400] sm:$0xff]
    %v226 = vld [vmem:[%s1 + $0x408] sm:$0xff]
    %v227 = vld [vmem:[%s1 + $0x410] sm:$0xff]
    %v228 = vld [vmem:[%s1 + $0x418] sm:$0xff]
    %v229 = vld [vmem:[%s1 + $0x420] sm:$0xff]
    %v230 = vld [vmem:[%s1 + $0x428] sm:$0xff]
    %v231 = vld [vmem:[%s1 + $0x430] sm:$0xff]
    %v232 = vld [vmem:[%s1 + $0x438] sm:$0xff]
    %v233 = vld [vmem:[%s1 + $0x440] sm:$0xff]
    %v234 = vld [vmem:[%s1 + $0x448] sm:$0xff]
    %v235 = vld [vmem:[%s1 + $0x450] sm:$0xff]
    %v236 = vld [vmem:[%s1 + $0x458] sm:$0xff]
    %v237 = vld [vmem:[%s1 + $0x460] sm:$0xff]
    %v238 = vld [vmem:[%s1 + $0x468] sm:$0xff]
    %v239 = vld [vmem:[%s1 + $0x470] sm:$0xff]
    %v240 = vld [vmem:[%s1 + $0x478] sm:$0xff]
    %v241 = vld [vmem:[%s1 + $0x480] sm:$0xff]
    %v242 = vld [vmem:[%s1 + $0x488] sm:$0xff]
    %v243 = vld [vmem:[%s1 + $0x490] sm:$0xff]
    %v244 = vld [vmem:[%s1 + $0x498] sm:$0xff]
    %v245 = vld [vmem:[%s1 + $0x4a0] sm:$0xff]
    %v246 = vld [vmem:[%s1 + $0x4a8] sm:$0xff]
    %v247 = vld [vmem:[%s1 + $0x4b0] sm:$0xff]
    %v248 = vld [vmem:[%s1 + $0x4b8] sm:$0xff]
    %v249 = vld [vmem:[%s1 + $0x4c0] sm:$0xff]
    %v250 = vld [vmem:[%s1 + $0x4c8] sm:$0xff]
    %v251 = vld [vmem:[%s1 + $0x4d0] sm:$0xff]
    %v252 = vld [vmem:[%s1 + $0x4d8] sm:$0xff]
    %v253 = vld [vmem:[%s1 + $0x4e0] sm:$0xff]
    %v254 = vld [vmem:[%s1 + $0x4e8] sm:$0xff]
    %v255 = vld [vmem:[%s1 + $0x4f0] sm:$0xff]
    %v256 = vld [vmem:[%s1 + $0x4f8] sm:$0xff]
    %v257 = vld [vmem:[%s1 + $0x500] sm:$0xff]
    %v258 = vld [vmem:[%s1 + $0x508] sm:$0xff]
    %v259 = vld [vmem:[%s1 + $0x510] sm:$0xff]
    %v260 = vld [vmem:[%s1 + $0x518] sm:$0xff]
    %v261 = vld [vmem:[%s1 + $0x520] sm:$0xff]
    %v262 = vld [vmem:[%s1 + $0x528] sm:$0xff]
    %v263 = vld [vmem:[%s1 + $0x530] sm:$0xff]
    %v264 = vld [vmem:[%s1 + $0x538] sm:$0xff]
    %v265 = vld [vmem:[%s1 + $0x540] sm:$0xff]
    %v266 = vld [vmem:[%s1 + $0x548] sm:$0xff]
    %v267 = vld [vmem:[%s1 + $0x550] sm:$0xff]
    %v268 = vld [vmem:[%s1 + $0x558] sm:$0xff]
    %v269 = vld [vmem:[%s1 + $0x560] sm:$0xff]
    %v270 = vld [vmem:[%s1 + $0x568] sm:$0xff]
    %v271 = vld [vmem:[%s1 + $0x570] sm:$0xff]
    %v272 = vld [vmem:[%s1 + $0x578] sm:$0xff]
    %v273 = vld [vmem:[%s1 + $0x580] sm:$0xff]
    %v274 = vld [vmem:[%s1 + $0x588] sm:$0xff]
    %v275 = vld [vmem:[%s1 + $0x590] sm:$0xff]
    %v276 = vld [vmem:[%s1 + $0x598] sm:$0xff]
    %v277 = vld [vmem:[%s1 + $0x5a0] sm:$0xff]
    %v278 = vld [vmem:[%s1 + $0x5a8] sm:$0xff]
    %v279 = vld [vmem:[%s1 + $0x5b0] sm:$0xff]
    %v280 = vld [vmem:[%s1 + $0x5b8] sm:$0xff]
    %v281 = vld [vmem:[%s1 + $0x5c0] sm:$0xff]
    %v282 = vld [vmem:[%s1 + $0x5c8] sm:$0xff]
    %v283 = vld [vmem:[%s1 + $0x5d0] sm:$0xff]
    %v284 = vld [vmem:[%s1 + $0x5d8] sm:$0xff]
    %v285 = vld [vmem:[%s1 + $0x5e0] sm:$0xff]
    %v286 = vld [vmem:[%s1 + $0x5e8] sm:$0xff]
    %v287 = vld [vmem:[%s1 + $0x5f0] sm:$0xff]
    %v288 = vld [vmem:[%s1 + $0x5f8] sm:$0xff]
    %v289 = vld [vmem:[%s1 + $0x600] sm:$0xff]
    %v290 = vld [vmem:[%s1 + $0x608] sm:$0xff]
    %v291 = vld [vmem:[%s1 + $0x610] sm:$0xff]
    %v292 = vld [vmem:[%s1 + $0x618] sm:$0xff]
    %v293 = vld [vmem:[%s2] sm:$0xf]
    %v295 = vlaneseq
    %v296 = vshrl.u32 %v295, 7
    %v297 = vsub.s32 0, %v296
    %v298 = vrot.slane %v293, %v297
    %v299 = vlaneseq
    %v300 = vshrl.u32 %v299, 7
    %v301 = vsub.s32 1, %v300
    %v302 = vrot.slane %v293, %v301
    %v303 = vlaneseq
    %v304 = vshrl.u32 %v303, 7
    %v305 = vsub.s32 2, %v304
    %v306 = vrot.slane %v293, %v305
    %v307 = vlaneseq
    %v308 = vshrl.u32 %v307, 7
    %v309 = vsub.s32 3, %v308
    %v310 = vrot.slane %v293, %v309
    %v511 = vunpack.c.l.b16 %v97
    %v512 = vunpack.c.h.b16 %v97
    %v513 = vunpack.c.l.b16 %v98
    %v514 = vunpack.c.h.b16 %v98
    %v515 = vunpack.c.l.b16 %v99
    %v516 = vunpack.c.h.b16 %v99
    %v517 = vunpack.c.l.b16 %v100
    %v518 = vunpack.c.h.b16 %v100
    %v519 = vunpack.c.l.b16 %v101
    %v520 = vunpack.c.h.b16 %v101
    %v521 = vunpack.c.l.b16 %v102
    %v522 = vunpack.c.h.b16 %v102
    %v523 = vunpack.c.l.b16 %v103
    %v524 = vunpack.c.h.b16 %v103
    %v525 = vunpack.c.l.b16 %v104
    %v526 = vunpack.c.h.b16 %v104
    %v527 = vunpack.c.l.b16 %v105
    %v528 = vunpack.c.h.b16 %v105
    %v529 = vunpack.c.l.b16 %v106
    %v530 = vunpack.c.h.b16 %v106
    %v531 = vunpack.c.l.b16 %v107
    %v532 = vunpack.c.h.b16 %v107
    %v533 = vunpack.c.l.b16 %v108
    %v534 = vunpack.c.h.b16 %v108
    %v535 = vunpack.c.l.b16 %v109
    %v536 = vunpack.c.h.b16 %v109
    %v537 = vunpack.c.l.b16 %v110
    %v538 = vunpack.c.h.b16 %v110
    %v539 = vunpack.c.l.b16 %v111
    %v540 = vunpack.c.h.b16 %v111
    %v541 = vunpack.c.l.b16 %v112
    %v542 = vunpack.c.h.b16 %v112
    %v543 = vunpack.c.l.b16 %v113
    %v544 = vunpack.c.h.b16 %v113
    %v545 = vunpack.c.l.b16 %v114
    %v546 = vunpack.c.h.b16 %v114
    %v547 = vunpack.c.l.b16 %v115
    %v548 = vunpack.c.h.b16 %v115
    %v549 = vunpack.c.l.b16 %v116
    %v550 = vunpack.c.h.b16 %v116
    %v551 = vunpack.c.l.b16 %v117
    %v552 = vunpack.c.h.b16 %v117
    %v553 = vunpack.c.l.b16 %v118
    %v554 = vunpack.c.h.b16 %v118
    %v555 = vunpack.c.l.b16 %v119
    %v556 = vunpack.c.h.b16 %v119
    %v557 = vunpack.c.l.b16 %v120
    %v558 = vunpack.c.h.b16 %v120
    %v559 = vunpack.c.l.b16 %v121
    %v560 = vunpack.c.h.b16 %v121
    %v561 = vunpack.c.l.b16 %v122
    %v562 = vunpack.c.h.b16 %v122
    %v563 = vunpack.c.l.b16 %v123
    %v564 = vunpack.c.h.b16 %v123
    %v565 = vunpack.c.l.b16 %v124
    %v566 = vunpack.c.h.b16 %v124
    %v567 = vunpack.c.l.b16 %v125
    %v568 = vunpack.c.h.b16 %v125
    %v569 = vunpack.c.l.b16 %v126
    %v570 = vunpack.c.h.b16 %v126
    %v571 = vunpack.c.l.b16 %v127
    %v572 = vunpack.c.h.b16 %v127
    %v573 = vunpack.c.l.b16 %v128
    %v574 = vunpack.c.h.b16 %v128
    %v575 = vunpack.c.l.b16 %v129
    %v576 = vunpack.c.h.b16 %v129
    %v577 = vunpack.c.l.b16 %v130
    %v578 = vunpack.c.h.b16 %v130
    %v579 = vunpack.c.l.b16 %v131
    %v580 = vunpack.c.h.b16 %v131
    %v581 = vunpack.c.l.b16 %v132
    %v582 = vunpack.c.h.b16 %v132
    %v583 = vunpack.c.l.b16 %v133
    %v584 = vunpack.c.h.b16 %v133
    %v585 = vunpack.c.l.b16 %v134
    %v586 = vunpack.c.h.b16 %v134
    %v587 = vunpack.c.l.b16 %v135
    %v588 = vunpack.c.h.b16 %v135
    %v589 = vunpack.c.l.b16 %v136
    %v590 = vunpack.c.h.b16 %v136
    %v591 = vunpack.c.l.b16 %v137
    %v592 = vunpack.c.h.b16 %v137
    %v593 = vunpack.c.l.b16 %v138
    %v594 = vunpack.c.h.b16 %v138
    %v595 = vunpack.c.l.b16 %v139
    %v596 = vunpack.c.h.b16 %v139
    %v597 = vunpack.c.l.b16 %v140
    %v598 = vunpack.c.h.b16 %v140
    %v599 = vunpack.c.l.b16 %v141
    %v600 = vunpack.c.h.b16 %v141
    %v601 = vunpack.c.l.b16 %v142
    %v602 = vunpack.c.h.b16 %v142
    %v603 = vunpack.c.l.b16 %v143
    %v604 = vunpack.c.h.b16 %v143
    %v605 = vunpack.c.l.b16 %v144
    %v606 = vunpack.c.h.b16 %v144
    %v607 = vunpack.c.l.b16 %v145
    %v608 = vunpack.c.h.b16 %v145
    %v609 = vunpack.c.l.b16 %v146
    %v610 = vunpack.c.h.b16 %v146
    %v611 = vunpack.c.l.b16 %v147
    %v612 = vunpack.c.h.b16 %v147
    %v613 = vunpack.c.l.b16 %v148
    %v614 = vunpack.c.h.b16 %v148
    %v615 = vunpack.c.l.b16 %v149
    %v616 = vunpack.c.h.b16 %v149
    %v617 = vunpack.c.l.b16 %v150
    %v618 = vunpack.c.h.b16 %v150
    %v619 = vunpack.c.l.b16 %v151
    %v620 = vunpack.c.h.b16 %v151
    %v621 = vunpack.c.l.b16 %v152
    %v622 = vunpack.c.h.b16 %v152
    %v623 = vunpack.c.l.b16 %v153
    %v624 = vunpack.c.h.b16 %v153
    %v625 = vunpack.c.l.b16 %v154
    %v626 = vunpack.c.h.b16 %v154
    %v627 = vunpack.c.l.b16 %v155
    %v628 = vunpack.c.h.b16 %v155
    %v629 = vunpack.c.l.b16 %v156
    %v630 = vunpack.c.h.b16 %v156
    %v631 = vunpack.c.l.b16 %v157
    %v632 = vunpack.c.h.b16 %v157
    %v633 = vunpack.c.l.b16 %v158
    %v634 = vunpack.c.h.b16 %v158
    %v635 = vunpack.c.l.b16 %v159
    %v636 = vunpack.c.h.b16 %v159
    %v637 = vunpack.c.l.b16 %v160
    %v638 = vunpack.c.h.b16 %v160
    %v639 = vunpack.c.l.b16 %v161
    %v640 = vunpack.c.h.b16 %v161
    %v641 = vunpack.c.l.b16 %v162
    %v642 = vunpack.c.h.b16 %v162
    %v643 = vunpack.c.l.b16 %v163
    %v644 = vunpack.c.h.b16 %v163
    %v645 = vunpack.c.l.b16 %v164
    %v646 = vunpack.c.h.b16 %v164
    %v647 = vunpack.c.l.b16 %v165
    %v648 = vunpack.c.h.b16 %v165
    %v649 = vunpack.c.l.b16 %v166
    %v650 = vunpack.c.h.b16 %v166
    %v651 = vunpack.c.l.b16 %v167
    %v652 = vunpack.c.h.b16 %v167
    %v653 = vunpack.c.l.b16 %v168
    %v654 = vunpack.c.h.b16 %v168
    %v655 = vunpack.c.l.b16 %v169
    %v656 = vunpack.c.h.b16 %v169
    %v657 = vunpack.c.l.b16 %v170
    %v658 = vunpack.c.h.b16 %v170
    %v659 = vunpack.c.l.b16 %v171
    %v660 = vunpack.c.h.b16 %v171
    %v661 = vunpack.c.l.b16 %v172
    %v662 = vunpack.c.h.b16 %v172
    %v663 = vunpack.c.l.b16 %v173
    %v664 = vunpack.c.h.b16 %v173
    %v665 = vunpack.c.l.b16 %v174
    %v666 = vunpack.c.h.b16 %v174
    %v667 = vunpack.c.l.b16 %v175
    %v668 = vunpack.c.h.b16 %v175
    %v669 = vunpack.c.l.b16 %v176
    %v670 = vunpack.c.h.b16 %v176
    %v671 = vunpack.c.l.b16 %v177
    %v672 = vunpack.c.h.b16 %v177
    %v673 = vunpack.c.l.b16 %v178
    %v674 = vunpack.c.h.b16 %v178
    %v675 = vunpack.c.l.b16 %v179
    %v676 = vunpack.c.h.b16 %v179
    %v677 = vunpack.c.l.b16 %v180
    %v678 = vunpack.c.h.b16 %v180
    %v679 = vunpack.c.l.b16 %v181
    %v680 = vunpack.c.h.b16 %v181
    %v681 = vunpack.c.l.b16 %v182
    %v682 = vunpack.c.h.b16 %v182
    %v683 = vunpack.c.l.b16 %v183
    %v684 = vunpack.c.h.b16 %v183
    %v685 = vunpack.c.l.b16 %v184
    %v686 = vunpack.c.h.b16 %v184
    %v687 = vunpack.c.l.b16 %v185
    %v688 = vunpack.c.h.b16 %v185
    %v689 = vunpack.c.l.b16 %v186
    %v690 = vunpack.c.h.b16 %v186
    %v691 = vunpack.c.l.b16 %v187
    %v692 = vunpack.c.h.b16 %v187
    %v693 = vunpack.c.l.b16 %v188
    %v694 = vunpack.c.h.b16 %v188
    %v695 = vunpack.c.l.b16 %v189
    %v696 = vunpack.c.h.b16 %v189
    %v697 = vunpack.c.l.b16 %v190
    %v698 = vunpack.c.h.b16 %v190
    %v699 = vunpack.c.l.b16 %v191
    %v700 = vunpack.c.h.b16 %v191
    %v701 = vunpack.c.l.b16 %v192
    %v702 = vunpack.c.h.b16 %v192
    %v703 = vunpack.c.l.b16 %v193
    %v704 = vunpack.c.h.b16 %v193
    %v705 = vunpack.c.l.b16 %v194
    %v706 = vunpack.c.h.b16 %v194
    %v707 = vunpack.c.l.b16 %v195
    %v708 = vunpack.c.h.b16 %v195
    %v709 = vunpack.c.l.b16 %v196
    %v710 = vunpack.c.h.b16 %v196
    %v711 = vunpack.c.l.b16 %v197
    %v712 = vunpack.c.h.b16 %v197
    %v713 = vunpack.c.l.b16 %v198
    %v714 = vunpack.c.h.b16 %v198
    %v715 = vunpack.c.l.b16 %v199
    %v716 = vunpack.c.h.b16 %v199
    %v717 = vunpack.c.l.b16 %v200
    %v718 = vunpack.c.h.b16 %v200
    %v719 = vunpack.c.l.b16 %v201
    %v720 = vunpack.c.h.b16 %v201
    %v721 = vunpack.c.l.b16 %v202
    %v722 = vunpack.c.h.b16 %v202
    %v723 = vunpack.c.l.b16 %v203
    %v724 = vunpack.c.h.b16 %v203
    %v725 = vunpack.c.l.b16 %v204
    %v726 = vunpack.c.h.b16 %v204
    %v727 = vunpack.c.l.b16 %v205
    %v728 = vunpack.c.h.b16 %v205
    %v729 = vunpack.c.l.b16 %v206
    %v730 = vunpack.c.h.b16 %v206
    %v731 = vunpack.c.l.b16 %v207
    %v732 = vunpack.c.h.b16 %v207
    %v733 = vunpack.c.l.b16 %v208
    %v734 = vunpack.c.h.b16 %v208
    %v735 = vunpack.c.l.b16 %v209
    %v736 = vunpack.c.h.b16 %v209
    %v737 = vunpack.c.l.b16 %v210
    %v738 = vunpack.c.h.b16 %v210
    %v739 = vunpack.c.l.b16 %v211
    %v740 = vunpack.c.h.b16 %v211
    %v741 = vunpack.c.l.b16 %v212
    %v742 = vunpack.c.h.b16 %v212
    %v743 = vunpack.c.l.b16 %v213
    %v744 = vunpack.c.h.b16 %v213
    %v745 = vunpack.c.l.b16 %v214
    %v746 = vunpack.c.h.b16 %v214
    %v747 = vunpack.c.l.b16 %v215
    %v748 = vunpack.c.h.b16 %v215
    %v749 = vunpack.c.l.b16 %v216
    %v750 = vunpack.c.h.b16 %v216
    %v751 = vunpack.c.l.b16 %v217
    %v752 = vunpack.c.h.b16 %v217
    %v753 = vunpack.c.l.b16 %v218
    %v754 = vunpack.c.h.b16 %v218
    %v755 = vunpack.c.l.b16 %v219
    %v756 = vunpack.c.h.b16 %v219
    %v757 = vunpack.c.l.b16 %v220
    %v758 = vunpack.c.h.b16 %v220
    %v759 = vunpack.c.l.b16 %v221
    %v760 = vunpack.c.h.b16 %v221
    %v761 = vunpack.c.l.b16 %v222
    %v762 = vunpack.c.h.b16 %v222
    %v763 = vunpack.c.l.b16 %v223
    %v764 = vunpack.c.h.b16 %v223
    %v765 = vunpack.c.l.b16 %v224
    %v766 = vunpack.c.h.b16 %v224
    %v767 = vunpack.c.l.b16 %v225
    %v768 = vunpack.c.h.b16 %v225
    %v769 = vunpack.c.l.b16 %v226
    %v770 = vunpack.c.h.b16 %v226
    %v771 = vunpack.c.l.b16 %v227
    %v772 = vunpack.c.h.b16 %v227
    %v773 = vunpack.c.l.b16 %v228
    %v774 = vunpack.c.h.b16 %v228
    %v775 = vunpack.c.l.b16 %v229
    %v776 = vunpack.c.h.b16 %v229
    %v777 = vunpack.c.l.b16 %v230
    %v778 = vunpack.c.h.b16 %v230
    %v779 = vunpack.c.l.b16 %v231
    %v780 = vunpack.c.h.b16 %v231
    %v781 = vunpack.c.l.b16 %v232
    %v782 = vunpack.c.h.b16 %v232
    %v783 = vunpack.c.l.b16 %v233
    %v784 = vunpack.c.h.b16 %v233
    %v785 = vunpack.c.l.b16 %v234
    %v786 = vunpack.c.h.b16 %v234
    %v787 = vunpack.c.l.b16 %v235
    %v788 = vunpack.c.h.b16 %v235
    %v789 = vunpack.c.l.b16 %v236
    %v790 = vunpack.c.h.b16 %v236
    %v791 = vunpack.c.l.b16 %v237
    %v792 = vunpack.c.h.b16 %v237
    %v793 = vunpack.c.l.b16 %v238
    %v794 = vunpack.c.h.b16 %v238
    %v795 = vunpack.c.l.b16 %v239
    %v796 = vunpack.c.h.b16 %v239
    %v797 = vunpack.c.l.b16 %v240
    %v798 = vunpack.c.h.b16 %v240
    %v799 = vunpack.c.l.b16 %v241
    %v800 = vunpack.c.h.b16 %v241
    %v801 = vunpack.c.l.b16 %v242
    %v802 = vunpack.c.h.b16 %v242
    %v803 = vunpack.c.l.b16 %v243
    %v804 = vunpack.c.h.b16 %v243
    %v805 = vunpack.c.l.b16 %v244
    %v806 = vunpack.c.h.b16 %v244
    %v807 = vunpack.c.l.b16 %v245
    %v808 = vunpack.c.h.b16 %v245
    %v809 = vunpack.c.l.b16 %v246
    %v810 = vunpack.c.h.b16 %v246
    %v811 = vunpack.c.l.b16 %v247
    %v812 = vunpack.c.h.b16 %v247
    %v813 = vunpack.c.l.b16 %v248
    %v814 = vunpack.c.h.b16 %v248
    %v815 = vunpack.c.l.b16 %v249
    %v816 = vunpack.c.h.b16 %v249
    %v817 = vunpack.c.l.b16 %v250
    %v818 = vunpack.c.h.b16 %v250
    %v819 = vunpack.c.l.b16 %v251
    %v820 = vunpack.c.h.b16 %v251
    %v821 = vunpack.c.l.b16 %v252
    %v822 = vunpack.c.h.b16 %v252
    %v823 = vunpack.c.l.b16 %v253
    %v824 = vunpack.c.h.b16 %v253
    %v825 = vunpack.c.l.b16 %v254
    %v826 = vunpack.c.h.b16 %v254
    %v827 = vunpack.c.l.b16 %v255
    %v828 = vunpack.c.h.b16 %v255
    %v829 = vunpack.c.l.b16 %v256
    %v830 = vunpack.c.h.b16 %v256
    %v831 = vunpack.c.l.b16 %v257
    %v832 = vunpack.c.h.b16 %v257
    %v833 = vunpack.c.l.b16 %v258
    %v834 = vunpack.c.h.b16 %v258
    %v835 = vunpack.c.l.b16 %v259
    %v836 = vunpack.c.h.b16 %v259
    %v837 = vunpack.c.l.b16 %v260
    %v838 = vunpack.c.h.b16 %v260
    %v839 = vunpack.c.l.b16 %v261
    %v840 = vunpack.c.h.b16 %v261
    %v841 = vunpack.c.l.b16 %v262
    %v842 = vunpack.c.h.b16 %v262
    %v843 = vunpack.c.l.b16 %v263
    %v844 = vunpack.c.h.b16 %v263
    %v845 = vunpack.c.l.b16 %v264
    %v846 = vunpack.c.h.b16 %v264
    %v847 = vunpack.c.l.b16 %v265
    %v848 = vunpack.c.h.b16 %v265
    %v849 = vunpack.c.l.b16 %v266
    %v850 = vunpack.c.h.b16 %v266
    %v851 = vunpack.c.l.b16 %v267
    %v852 = vunpack.c.h.b16 %v267
    %v853 = vunpack.c.l.b16 %v268
    %v854 = vunpack.c.h.b16 %v268
    %v855 = vunpack.c.l.b16 %v269
    %v856 = vunpack.c.h.b16 %v269
    %v857 = vunpack.c.l.b16 %v270
    %v858 = vunpack.c.h.b16 %v270
    %v859 = vunpack.c.l.b16 %v271
    %v860 = vunpack.c.h.b16 %v271
    %v861 = vunpack.c.l.b16 %v272
    %v862 = vunpack.c.h.b16 %v272
    %v863 = vunpack.c.l.b16 %v273
    %v864 = vunpack.c.h.b16 %v273
    %v865 = vunpack.c.l.b16 %v274
    %v866 = vunpack.c.h.b16 %v274
    %v867 = vunpack.c.l.b16 %v275
    %v868 = vunpack.c.h.b16 %v275
    %v869 = vunpack.c.l.b16 %v276
    %v870 = vunpack.c.h.b16 %v276
    %v871 = vunpack.c.l.b16 %v277
    %v872 = vunpack.c.h.b16 %v277
    %v873 = vunpack.c.l.b16 %v278
    %v874 = vunpack.c.h.b16 %v278
    %v875 = vunpack.c.l.b16 %v279
    %v876 = vunpack.c.h.b16 %v279
    %v877 = vunpack.c.l.b16 %v280
    %v878 = vunpack.c.h.b16 %v280
    %v879 = vunpack.c.l.b16 %v281
    %v880 = vunpack.c.h.b16 %v281
    %v881 = vunpack.c.l.b16 %v282
    %v882 = vunpack.c.h.b16 %v282
    %v883 = vunpack.c.l.b16 %v283
    %v884 = vunpack.c.h.b16 %v283
    %v885 = vunpack.c.l.b16 %v284
    %v886 = vunpack.c.h.b16 %v284
    %v887 = vunpack.c.l.b16 %v285
    %v888 = vunpack.c.h.b16 %v285
    %v889 = vunpack.c.l.b16 %v286
    %v890 = vunpack.c.h.b16 %v286
    %v891 = vunpack.c.l.b16 %v287
    %v892 = vunpack.c.h.b16 %v287
    %v893 = vunpack.c.l.b16 %v288
    %v894 = vunpack.c.h.b16 %v288
    %v895 = vunpack.c.l.b16 %v289
    %v896 = vunpack.c.h.b16 %v289
    %v897 = vunpack.c.l.b16 %v290
    %v898 = vunpack.c.h.b16 %v290
    %v899 = vunpack.c.l.b16 %v291
    %v900 = vunpack.c.h.b16 %v291
    %v901 = vunpack.c.l.b16 %v292
    %v902 = vunpack.c.h.b16 %v292
    %v903 = vpack.c.b16 %v515, %v511
    %v904 = vpack.c.b16 %v516, %v512
    %v905 = vpack.c.b16 %v517, %v513
    %v906 = vpack.c.b16 %v518, %v514
    %v907 = vpack.c.b16 %v523, %v519
    %v908 = vpack.c.b16 %v524, %v520
    %v909 = vpack.c.b16 %v525, %v521
    %v910 = vpack.c.b16 %v526, %v522
    %v911 = vpack.c.b16 %v531, %v527
    %v912 = vpack.c.b16 %v532, %v528
    %v913 = vpack.c.b16 %v533, %v529
    %v914 = vpack.c.b16 %v534, %v530
    %v915 = vpack.c.b16 %v539, %v535
    %v916 = vpack.c.b16 %v540, %v536
    %v917 = vpack.c.b16 %v541, %v537
    %v918 = vpack.c.b16 %v542, %v538
    %v919 = vpack.c.b16 %v547, %v543
    %v920 = vpack.c.b16 %v548, %v544
    %v921 = vpack.c.b16 %v549, %v545
    %v922 = vpack.c.b16 %v550, %v546
    %v923 = vpack.c.b16 %v555, %v551
    %v924 = vpack.c.b16 %v556, %v552
    %v925 = vpack.c.b16 %v557, %v553
    %v926 = vpack.c.b16 %v558, %v554
    %v927 = vpack.c.b16 %v563, %v559
    %v928 = vpack.c.b16 %v564, %v560
    %v929 = vpack.c.b16 %v565, %v561
    %v930 = vpack.c.b16 %v566, %v562
    %v931 = vpack.c.b16 %v571, %v567
    %v932 = vpack.c.b16 %v572, %v568
    %v933 = vpack.c.b16 %v573, %v569
    %v934 = vpack.c.b16 %v574, %v570
    %v935 = vpack.c.b16 %v579, %v575
    %v936 = vpack.c.b16 %v580, %v576
    %v937 = vpack.c.b16 %v581, %v577
    %v938 = vpack.c.b16 %v582, %v578
    %v939 = vpack.c.b16 %v587, %v583
    %v940 = vpack.c.b16 %v588, %v584
    %v941 = vpack.c.b16 %v589, %v585
    %v942 = vpack.c.b16 %v590, %v586
    %v943 = vpack.c.b16 %v595, %v591
    %v944 = vpack.c.b16 %v596, %v592
    %v945 = vpack.c.b16 %v597, %v593
    %v946 = vpack.c.b16 %v598, %v594
    %v947 = vpack.c.b16 %v603, %v599
    %v948 = vpack.c.b16 %v604, %v600
    %v949 = vpack.c.b16 %v605, %v601
    %v950 = vpack.c.b16 %v606, %v602
    %v951 = vpack.c.b16 %v611, %v607
    %v952 = vpack.c.b16 %v612, %v608
    %v953 = vpack.c.b16 %v613, %v609
    %v954 = vpack.c.b16 %v614, %v610
    %v955 = vpack.c.b16 %v619, %v615
    %v956 = vpack.c.b16 %v620, %v616
    %v957 = vpack.c.b16 %v621, %v617
    %v958 = vpack.c.b16 %v622, %v618
    %v959 = vpack.c.b16 %v627, %v623
    %v960 = vpack.c.b16 %v628, %v624
    %v961 = vpack.c.b16 %v629, %v625
    %v962 = vpack.c.b16 %v630, %v626
    %v963 = vpack.c.b16 %v635, %v631
    %v964 = vpack.c.b16 %v636, %v632
    %v965 = vpack.c.b16 %v637, %v633
    %v966 = vpack.c.b16 %v638, %v634
    %v967 = vpack.c.b16 %v643, %v639
    %v968 = vpack.c.b16 %v644, %v640
    %v969 = vpack.c.b16 %v645, %v641
    %v970 = vpack.c.b16 %v646, %v642
    %v971 = vpack.c.b16 %v651, %v647
    %v972 = vpack.c.b16 %v652, %v648
    %v973 = vpack.c.b16 %v653, %v649
    %v974 = vpack.c.b16 %v654, %v650
    %v975 = vpack.c.b16 %v659, %v655
    %v976 = vpack.c.b16 %v660, %v656
    %v977 = vpack.c.b16 %v661, %v657
    %v978 = vpack.c.b16 %v662, %v658
    %v979 = vpack.c.b16 %v667, %v663
    %v980 = vpack.c.b16 %v668, %v664
    %v981 = vpack.c.b16 %v669, %v665
    %v982 = vpack.c.b16 %v670, %v666
    %v983 = vpack.c.b16 %v675, %v671
    %v984 = vpack.c.b16 %v676, %v672
    %v985 = vpack.c.b16 %v677, %v673
    %v986 = vpack.c.b16 %v678, %v674
    %v987 = vpack.c.b16 %v683, %v679
    %v988 = vpack.c.b16 %v684, %v680
    %v989 = vpack.c.b16 %v685, %v681
    %v990 = vpack.c.b16 %v686, %v682
    %v991 = vpack.c.b16 %v691, %v687
    %v992 = vpack.c.b16 %v692, %v688
    %v993 = vpack.c.b16 %v693, %v689
    %v994 = vpack.c.b16 %v694, %v690
    %v995 = vpack.c.b16 %v699, %v695
    %v996 = vpack.c.b16 %v700, %v696
    %v997 = vpack.c.b16 %v701, %v697
    %v998 = vpack.c.b16 %v702, %v698
    %v999 = vpack.c.b16 %v707, %v703
    %v1000 = vpack.c.b16 %v708, %v704
    %v1001 = vpack.c.b16 %v709, %v705
    %v1002 = vpack.c.b16 %v710, %v706
    %v1003 = vpack.c.b16 %v715, %v711
    %v1004 = vpack.c.b16 %v716, %v712
    %v1005 = vpack.c.b16 %v717, %v713
    %v1006 = vpack.c.b16 %v718, %v714
    %v1007 = vpack.c.b16 %v723, %v719
    %v1008 = vpack.c.b16 %v724, %v720
    %v1009 = vpack.c.b16 %v725, %v721
    %v1010 = vpack.c.b16 %v726, %v722
    %v1011 = vpack.c.b16 %v731, %v727
    %v1012 = vpack.c.b16 %v732, %v728
    %v1013 = vpack.c.b16 %v733, %v729
    %v1014 = vpack.c.b16 %v734, %v730
    %v1015 = vpack.c.b16 %v739, %v735
    %v1016 = vpack.c.b16 %v740, %v736
    %v1017 = vpack.c.b16 %v741, %v737
    %v1018 = vpack.c.b16 %v742, %v738
    %v1019 = vpack.c.b16 %v747, %v743
    %v1020 = vpack.c.b16 %v748, %v744
    %v1021 = vpack.c.b16 %v749, %v745
    %v1022 = vpack.c.b16 %v750, %v746
    %v1023 = vpack.c.b16 %v755, %v751
    %v1024 = vpack.c.b16 %v756, %v752
    %v1025 = vpack.c.b16 %v757, %v753
    %v1026 = vpack.c.b16 %v758, %v754
    %v1027 = vpack.c.b16 %v763, %v759
    %v1028 = vpack.c.b16 %v764, %v760
    %v1029 = vpack.c.b16 %v765, %v761
    %v1030 = vpack.c.b16 %v766, %v762
    %v1031 = vpack.c.b16 %v771, %v767
    %v1032 = vpack.c.b16 %v772, %v768
    %v1033 = vpack.c.b16 %v773, %v769
    %v1034 = vpack.c.b16 %v774, %v770
    %v1035 = vpack.c.b16 %v779, %v775
    %v1036 = vpack.c.b16 %v780, %v776
    %v1037 = vpack.c.b16 %v781, %v777
    %v1038 = vpack.c.b16 %v782, %v778
    %v1039 = vpack.c.b16 %v787, %v783
    %v1040 = vpack.c.b16 %v788, %v784
    %v1041 = vpack.c.b16 %v789, %v785
    %v1042 = vpack.c.b16 %v790, %v786
    %v1043 = vpack.c.b16 %v795, %v791
    %v1044 = vpack.c.b16 %v796, %v792
    %v1045 = vpack.c.b16 %v797, %v793
    %v1046 = vpack.c.b16 %v798, %v794
    %v1047 = vpack.c.b16 %v803, %v799
    %v1048 = vpack.c.b16 %v804, %v800
    %v1049 = vpack.c.b16 %v805, %v801
    %v1050 = vpack.c.b16 %v806, %v802
    %v1051 = vpack.c.b16 %v811, %v807
    %v1052 = vpack.c.b16 %v812, %v808
    %v1053 = vpack.c.b16 %v813, %v809
    %v1054 = vpack.c.b16 %v814, %v810
    %v1055 = vpack.c.b16 %v819, %v815
    %v1056 = vpack.c.b16 %v820, %v816
    %v1057 = vpack.c.b16 %v821, %v817
    %v1058 = vpack.c.b16 %v822, %v818
    %v1059 = vpack.c.b16 %v827, %v823
    %v1060 = vpack.c.b16 %v828, %v824
    %v1061 = vpack.c.b16 %v829, %v825
    %v1062 = vpack.c.b16 %v830, %v826
    %v1063 = vpack.c.b16 %v835, %v831
    %v1064 = vpack.c.b16 %v836, %v832
    %v1065 = vpack.c.b16 %v837, %v833
    %v1066 = vpack.c.b16 %v838, %v834
    %v1067 = vpack.c.b16 %v843, %v839
    %v1068 = vpack.c.b16 %v844, %v840
    %v1069 = vpack.c.b16 %v845, %v841
    %v1070 = vpack.c.b16 %v846, %v842
    %v1071 = vpack.c.b16 %v851, %v847
    %v1072 = vpack.c.b16 %v852, %v848
    %v1073 = vpack.c.b16 %v853, %v849
    %v1074 = vpack.c.b16 %v854, %v850
    %v1075 = vpack.c.b16 %v859, %v855
    %v1076 = vpack.c.b16 %v860, %v856
    %v1077 = vpack.c.b16 %v861, %v857
    %v1078 = vpack.c.b16 %v862, %v858
    %v1079 = vpack.c.b16 %v867, %v863
    %v1080 = vpack.c.b16 %v868, %v864
    %v1081 = vpack.c.b16 %v869, %v865
    %v1082 = vpack.c.b16 %v870, %v866
    %v1083 = vpack.c.b16 %v875, %v871
    %v1084 = vpack.c.b16 %v876, %v872
    %v1085 = vpack.c.b16 %v877, %v873
    %v1086 = vpack.c.b16 %v878, %v874
    %v1087 = vpack.c.b16 %v883, %v879
    %v1088 = vpack.c.b16 %v884, %v880
    %v1089 = vpack.c.b16 %v885, %v881
    %v1090 = vpack.c.b16 %v886, %v882
    %v1091 = vpack.c.b16 %v891, %v887
    %v1092 = vpack.c.b16 %v892, %v888
    %v1093 = vpack.c.b16 %v893, %v889
    %v1094 = vpack.c.b16 %v894, %v890
    %v1095 = vpack.c.b16 %v899, %v895
    %v1096 = vpack.c.b16 %v900, %v896
    %v1097 = vpack.c.b16 %v901, %v897
    %v1098 = vpack.c.b16 %v902, %v898
    %vm1295 = vcmask 130048
    %v1297 = vsel %vm1295, %v96, 0
    %1299 = vmatprep.subr.bf16.mxu0 %v932
    %1300 = vmatpush1.bf16.msra.mxu0 %v931
    %1301 = vmatprep.subr.bf16.mxu0 %v928
    %1302 = vmatpush1.bf16.msra.mxu0 %v927
    %1303 = vmatprep.subr.bf16.mxu0 %v924
    %1304 = vmatpush1.bf16.msra.mxu0 %v923
    %1305 = vmatprep.subr.bf16.mxu0 %v920
    %1306 = vmatpush1.bf16.msra.mxu0 %v919
    %1307 = vmatprep.subr.bf16.mxu0 %v916
    %1308 = vmatpush1.bf16.msra.mxu0 %v915
    %1309 = vmatprep.subr.bf16.mxu0 %v912
    %1310 = vmatpush1.bf16.msra.mxu0 %v911
    %1311 = vmatprep.subr.bf16.mxu0 %v908
    %1312 = vmatpush1.bf16.msra.mxu0 %v907
    %1313 = vmatprep.subr.bf16.mxu0 %v904
    %1314 = vmatpush1.bf16.msra.mxu0 %v903
    %1315 = vmatprep.subr.bf16.mxu0 %v964
    %1316 = vmatpush2.bf16.msra.mxu0 %v963
    %1317 = vmatprep.subr.bf16.mxu0 %v960
    %1318 = vmatpush2.bf16.msra.mxu0 %v959
    %1319 = vmatprep.subr.bf16.mxu0 %v956
    %1320 = vmatpush2.bf16.msra.mxu0 %v955
    %1321 = vmatprep.subr.bf16.mxu0 %v952
    %1322 = vmatpush2.bf16.msra.mxu0 %v951
    %1323 = vmatprep.subr.bf16.mxu0 %v948
    %1324 = vmatpush2.bf16.msra.mxu0 %v947
    %1325 = vmatprep.subr.bf16.mxu0 %v944
    %1326 = vmatpush2.bf16.msra.mxu0 %v943
    %1327 = vmatprep.subr.bf16.mxu0 %v940
    %1328 = vmatpush2.bf16.msra.mxu0 %v939
    %1329 = vmatprep.subr.bf16.mxu0 %v936
    %1330 = vmatpush2.bf16.msra.mxu0 %v935
    %1331 = vmatprep.mubr.bf16.mxu0 %v91
    %1332 = vmatmul.mubr.bf16.gmra.mxu0 %v90
    %v1333 = vpop.f32.mrf.mxu0
    %v1334 = vadd.f32 %v298, %v1333
    %v1335 = vpop.f32.mrf.mxu0
    %v1336 = vadd.f32 %v302, %v1335
    %v1337 = vpop.f32.mrf.mxu0
    %v1338 = vpop.f32.mrf.mxu0
    %1339 = vdwg.mxu0
    %1340 = vmatprep.subr.bf16.mxu0 %v996
    %1341 = vmatpush1.bf16.msra.mxu0 %v995
    %1342 = vmatprep.subr.bf16.mxu0 %v992
    %1343 = vmatpush1.bf16.msra.mxu0 %v991
    %1344 = vmatprep.subr.bf16.mxu0 %v988
    %1345 = vmatpush1.bf16.msra.mxu0 %v987
    %1346 = vmatprep.subr.bf16.mxu0 %v984
    %1347 = vmatpush1.bf16.msra.mxu0 %v983
    %1348 = vmatprep.subr.bf16.mxu0 %v980
    %1349 = vmatpush1.bf16.msra.mxu0 %v979
    %1350 = vmatprep.subr.bf16.mxu0 %v976
    %1351 = vmatpush1.bf16.msra.mxu0 %v975
    %1352 = vmatprep.subr.bf16.mxu0 %v972
    %1353 = vmatpush1.bf16.msra.mxu0 %v971
    %1354 = vmatprep.subr.bf16.mxu0 %v968
    %1355 = vmatpush1.bf16.msra.mxu0 %v967
    %1356 = vmatprep.subr.bf16.mxu0 %v1028
    %1357 = vmatpush2.bf16.msra.mxu0 %v1027
    %1358 = vmatprep.subr.bf16.mxu0 %v1024
    %1359 = vmatpush2.bf16.msra.mxu0 %v1023
    %1360 = vmatprep.subr.bf16.mxu0 %v1020
    %1361 = vmatpush2.bf16.msra.mxu0 %v1019
    %1362 = vmatprep.subr.bf16.mxu0 %v1016
    %1363 = vmatpush2.bf16.msra.mxu0 %v1015
    %1364 = vmatprep.subr.bf16.mxu0 %v1012
    %1365 = vmatpush2.bf16.msra.mxu0 %v1011
    %1366 = vmatprep.subr.bf16.mxu0 %v1008
    %1367 = vmatpush2.bf16.msra.mxu0 %v1007
    %1368 = vmatprep.subr.bf16.mxu0 %v1004
    %1369 = vmatpush2.bf16.msra.mxu0 %v1003
    %1370 = vmatprep.subr.bf16.mxu0 %v1000
    %1371 = vmatpush2.bf16.msra.mxu0 %v999
    %1372 = vmatprep.mubr.bf16.mxu0 %v93
    %1373 = vmatmul.mubr.bf16.gmra.mxu0 %v92
    %v1374 = vpop.f32.mrf.mxu0
    %v1375 = vadd.f32 %v1334, %v1374
    %v1376 = vpop.f32.mrf.mxu0
    %v1377 = vadd.f32 %v1336, %v1376
    %v1378 = vpop.f32.mrf.mxu0
    %v1379 = vpop.f32.mrf.mxu0
    %1380 = vdwg.mxu0
    %1381 = vmatprep.subr.bf16.mxu0 %v1060
    %1382 = vmatpush1.bf16.msra.mxu0 %v1059
    %1383 = vmatprep.subr.bf16.mxu0 %v1056
    %1384 = vmatpush1.bf16.msra.mxu0 %v1055
    %1385 = vmatprep.subr.bf16.mxu0 %v1052
    %1386 = vmatpush1.bf16.msra.mxu0 %v1051
    %1387 = vmatprep.subr.bf16.mxu0 %v1048
    %1388 = vmatpush1.bf16.msra.mxu0 %v1047
    %1389 = vmatprep.subr.bf16.mxu0 %v1044
    %1390 = vmatpush1.bf16.msra.mxu0 %v1043
    %1391 = vmatprep.subr.bf16.mxu0 %v1040
    %1392 = vmatpush1.bf16.msra.mxu0 %v1039
    %1393 = vmatprep.subr.bf16.mxu0 %v1036
    %1394 = vmatpush1.bf16.msra.mxu0 %v1035
    %1395 = vmatprep.subr.bf16.mxu0 %v1032
    %1396 = vmatpush1.bf16.msra.mxu0 %v1031
    %1397 = vmatprep.subr.bf16.mxu0 %v1092
    %1398 = vmatpush2.bf16.msra.mxu0 %v1091
    %1399 = vmatprep.subr.bf16.mxu0 %v1088
    %1400 = vmatpush2.bf16.msra.mxu0 %v1087
    %1401 = vmatprep.subr.bf16.mxu0 %v1084
    %1402 = vmatpush2.bf16.msra.mxu0 %v1083
    %1403 = vmatprep.subr.bf16.mxu0 %v1080
    %1404 = vmatpush2.bf16.msra.mxu0 %v1079
    %1405 = vmatprep.subr.bf16.mxu0 %v1076
    %1406 = vmatpush2.bf16.msra.mxu0 %v1075
    %1407 = vmatprep.subr.bf16.mxu0 %v1072
    %1408 = vmatpush2.bf16.msra.mxu0 %v1071
    %1409 = vmatprep.subr.bf16.mxu0 %v1068
    %1410 = vmatpush2.bf16.msra.mxu0 %v1067
    %1411 = vmatprep.subr.bf16.mxu0 %v1064
    %1412 = vmatpush2.bf16.msra.mxu0 %v1063
    %1413 = vmatprep.mubr.bf16.mxu0 %v95
    %1414 = vmatmul.mubr.bf16.gmra.mxu0 %v94
    %v1415 = vpop.f32.mrf.mxu0
    %v1416 = vadd.f32 %v1375, %v1415
    %v1417 = vpop.f32.mrf.mxu0
    %v1418 = vadd.f32 %v1377, %v1417
    %v1419 = vpop.f32.mrf.mxu0
    %v1420 = vpop.f32.mrf.mxu0
    %1421 = vdwg.mxu0
    %1422 = vmatprep.subr.bf16.mxu0 0
    %1423 = vmatpush1.bf16.msra.mxu0 0
    %1424 = vmatprep.subr.bf16.mxu0 0
    %1425 = vmatpush1.bf16.msra.mxu0 0
    %1426 = vmatprep.subr.bf16.mxu0 0
    %1427 = vmatpush1.bf16.msra.mxu0 0
    %1428 = vmatprep.subr.bf16.mxu0 0
    %1429 = vmatpush1.bf16.msra.mxu0 0
    %1430 = vmatprep.subr.bf16.mxu0 0
    %1431 = vmatpush1.bf16.msra.mxu0 0
    %1432 = vmatprep.subr.bf16.mxu0 0
    %1433 = vmatpush1.bf16.msra.mxu0 0
    %1434 = vmatprep.subr.bf16.mxu0 0
    %1435 = vmatpush1.bf16.msra.mxu0 0
    %1436 = vmatprep.subr.bf16.mxu0 %v1096
    %1437 = vmatpush1.bf16.msra.mxu0 %v1095
    %1438 = vmatprep.subr.bf16.mxu0 0
    %1439 = vmatpush2.bf16.msra.mxu0 0
    %1440 = vmatprep.subr.bf16.mxu0 0
    %1441 = vmatpush2.bf16.msra.mxu0 0
    %1442 = vmatprep.subr.bf16.mxu0 0
    %1443 = vmatpush2.bf16.msra.mxu0 0
    %1444 = vmatprep.subr.bf16.mxu0 0
    %1445 = vmatpush2.bf16.msra.mxu0 0
    %1446 = vmatprep.subr.bf16.mxu0 0
    %1447 = vmatpush2.bf16.msra.mxu0 0
    %1448 = vmatprep.subr.bf16.mxu0 0
    %1449 = vmatpush2.bf16.msra.mxu0 0
    %1450 = vmatprep.subr.bf16.mxu0 0
    %1451 = vmatpush2.bf16.msra.mxu0 0
    %1452 = vmatprep.subr.bf16.mxu0 0
    %1453 = vmatpush2.bf16.msra.mxu0 0
    %1454 = vmatprep.mubr.bf16.mxu0 0
    %1455 = vmatmul.mubr.bf16.gmra.mxu0 %v1297
    %v1456 = vpop.f32.mrf.mxu0
    %v1457 = vadd.f32 %v1416, %v1456
    %v1458 = vpop.f32.mrf.mxu0
    %v1459 = vadd.f32 %v1418, %v1458
    %v1460 = vpop.f32.mrf.mxu0
    %v1461 = vpop.f32.mrf.mxu0
    %1462 = vdwg.mxu0
    %1463 = vmatprep.subr.bf16.mxu0 %v934
    %1464 = vmatpush1.bf16.msra.mxu0 %v933
    %1465 = vmatprep.subr.bf16.mxu0 %v930
    %1466 = vmatpush1.bf16.msra.mxu0 %v929
    %1467 = vmatprep.subr.bf16.mxu0 %v926
    %1468 = vmatpush1.bf16.msra.mxu0 %v925
    %1469 = vmatprep.subr.bf16.mxu0 %v922
    %1470 = vmatpush1.bf16.msra.mxu0 %v921
    %1471 = vmatprep.subr.bf16.mxu0 %v918
    %1472 = vmatpush1.bf16.msra.mxu0 %v917
    %1473 = vmatprep.subr.bf16.mxu0 %v914
    %1474 = vmatpush1.bf16.msra.mxu0 %v913
    %1475 = vmatprep.subr.bf16.mxu0 %v910
    %1476 = vmatpush1.bf16.msra.mxu0 %v909
    %1477 = vmatprep.subr.bf16.mxu0 %v906
    %1478 = vmatpush1.bf16.msra.mxu0 %v905
    %1479 = vmatprep.subr.bf16.mxu0 %v966
    %1480 = vmatpush2.bf16.msra.mxu0 %v965
    %1481 = vmatprep.subr.bf16.mxu0 %v962
    %1482 = vmatpush2.bf16.msra.mxu0 %v961
    %1483 = vmatprep.subr.bf16.mxu0 %v958
    %1484 = vmatpush2.bf16.msra.mxu0 %v957
    %1485 = vmatprep.subr.bf16.mxu0 %v954
    %1486 = vmatpush2.bf16.msra.mxu0 %v953
    %1487 = vmatprep.subr.bf16.mxu0 %v950
    %1488 = vmatpush2.bf16.msra.mxu0 %v949
    %1489 = vmatprep.subr.bf16.mxu0 %v946
    %1490 = vmatpush2.bf16.msra.mxu0 %v945
    %1491 = vmatprep.subr.bf16.mxu0 %v942
    %1492 = vmatpush2.bf16.msra.mxu0 %v941
    %1493 = vmatprep.subr.bf16.mxu0 %v938
    %1494 = vmatpush2.bf16.msra.mxu0 %v937
    %1495 = vmatprep.mubr.bf16.mxu0 %v91
    %1496 = vmatmul.mubr.bf16.gmra.mxu0 %v90
    %v1497 = vpop.f32.mrf.mxu0
    %v1498 = vadd.f32 %v306, %v1497
    %v1499 = vpop.f32.mrf.mxu0
    %v1500 = vadd.f32 %v310, %v1499
    %v1501 = vpop.f32.mrf.mxu0
    %v1502 = vpop.f32.mrf.mxu0
    %1503 = vdwg.mxu0
    %1504 = vmatprep.subr.bf16.mxu0 %v998
    %1505 = vmatpush1.bf16.msra.mxu0 %v997
    %1506 = vmatprep.subr.bf16.mxu0 %v994
    %1507 = vmatpush1.bf16.msra.mxu0 %v993
    %1508 = vmatprep.subr.bf16.mxu0 %v990
    %1509 = vmatpush1.bf16.msra.mxu0 %v989
    %1510 = vmatprep.subr.bf16.mxu0 %v986
    %1511 = vmatpush1.bf16.msra.mxu0 %v985
    %1512 = vmatprep.subr.bf16.mxu0 %v982
    %1513 = vmatpush1.bf16.msra.mxu0 %v981
    %1514 = vmatprep.subr.bf16.mxu0 %v978
    %1515 = vmatpush1.bf16.msra.mxu0 %v977
    %1516 = vmatprep.subr.bf16.mxu0 %v974
    %1517 = vmatpush1.bf16.msra.mxu0 %v973
    %1518 = vmatprep.subr.bf16.mxu0 %v970
    %1519 = vmatpush1.bf16.msra.mxu0 %v969
    %1520 = vmatprep.subr.bf16.mxu0 %v1030
    %1521 = vmatpush2.bf16.msra.mxu0 %v1029
    %1522 = vmatprep.subr.bf16.mxu0 %v1026
    %1523 = vmatpush2.bf16.msra.mxu0 %v1025
    %1524 = vmatprep.subr.bf16.mxu0 %v1022
    %1525 = vmatpush2.bf16.msra.mxu0 %v1021
    %1526 = vmatprep.subr.bf16.mxu0 %v1018
    %1527 = vmatpush2.bf16.msra.mxu0 %v1017
    %1528 = vmatprep.subr.bf16.mxu0 %v1014
    %1529 = vmatpush2.bf16.msra.mxu0 %v1013
    %1530 = vmatprep.subr.bf16.mxu0 %v1010
    %1531 = vmatpush2.bf16.msra.mxu0 %v1009
    %1532 = vmatprep.subr.bf16.mxu0 %v1006
    %1533 = vmatpush2.bf16.msra.mxu0 %v1005
    %1534 = vmatprep.subr.bf16.mxu0 %v1002
    %1535 = vmatpush2.bf16.msra.mxu0 %v1001
    %1536 = vmatprep.mubr.bf16.mxu0 %v93
    %1537 = vmatmul.mubr.bf16.gmra.mxu0 %v92
    %v1538 = vpop.f32.mrf.mxu0
    %v1539 = vadd.f32 %v1498, %v1538
    %v1540 = vpop.f32.mrf.mxu0
    %v1541 = vadd.f32 %v1500, %v1540
    %v1542 = vpop.f32.mrf.mxu0
    %v1543 = vpop.f32.mrf.mxu0
    %1544 = vdwg.mxu0
    %1545 = vmatprep.subr.bf16.mxu0 %v1062
    %1546 = vmatpush1.bf16.msra.mxu0 %v1061
    %1547 = vmatprep.subr.bf16.mxu0 %v1058
    %1548 = vmatpush1.bf16.msra.mxu0 %v1057
    %1549 = vmatprep.subr.bf16.mxu0 %v1054
    %1550 = vmatpush1.bf16.msra.mxu0 %v1053
    %1551 = vmatprep.subr.bf16.mxu0 %v1050
    %1552 = vmatpush1.bf16.msra.mxu0 %v1049
    %1553 = vmatprep.subr.bf16.mxu0 %v1046
    %1554 = vmatpush1.bf16.msra.mxu0 %v1045
    %1555 = vmatprep.subr.bf16.mxu0 %v1042
    %1556 = vmatpush1.bf16.msra.mxu0 %v1041
    %1557 = vmatprep.subr.bf16.mxu0 %v1038
    %1558 = vmatpush1.bf16.msra.mxu0 %v1037
    %1559 = vmatprep.subr.bf16.mxu0 %v1034
    %1560 = vmatpush1.bf16.msra.mxu0 %v1033
    %1561 = vmatprep.subr.bf16.mxu0 %v1094
    %1562 = vmatpush2.bf16.msra.mxu0 %v1093
    %1563 = vmatprep.subr.bf16.mxu0 %v1090
    %1564 = vmatpush2.bf16.msra.mxu0 %v1089
    %1565 = vmatprep.subr.bf16.mxu0 %v1086
    %1566 = vmatpush2.bf16.msra.mxu0 %v1085
    %1567 = vmatprep.subr.bf16.mxu0 %v1082
    %1568 = vmatpush2.bf16.msra.mxu0 %v1081
    %1569 = vmatprep.subr.bf16.mxu0 %v1078
    %1570 = vmatpush2.bf16.msra.mxu0 %v1077
    %1571 = vmatprep.subr.bf16.mxu0 %v1074
    %1572 = vmatpush2.bf16.msra.mxu0 %v1073
    %1573 = vmatprep.subr.bf16.mxu0 %v1070
    %1574 = vmatpush2.bf16.msra.mxu0 %v1069
    %1575 = vmatprep.subr.bf16.mxu0 %v1066
    %1576 = vmatpush2.bf16.msra.mxu0 %v1065
    %1577 = vmatprep.mubr.bf16.mxu0 %v95
    %1578 = vmatmul.mubr.bf16.gmra.mxu0 %v94
    %v1579 = vpop.f32.mrf.mxu0
    %v1580 = vadd.f32 %v1539, %v1579
    %v1581 = vpop.f32.mrf.mxu0
    %v1582 = vadd.f32 %v1541, %v1581
    %v1583 = vpop.f32.mrf.mxu0
    %v1584 = vpop.f32.mrf.mxu0
    %1585 = vdwg.mxu0
    %1586 = vmatprep.subr.bf16.mxu0 0
    %1587 = vmatpush1.bf16.msra.mxu0 0
    %1588 = vmatprep.subr.bf16.mxu0 0
    %1589 = vmatpush1.bf16.msra.mxu0 0
    %1590 = vmatprep.subr.bf16.mxu0 0
    %1591 = vmatpush1.bf16.msra.mxu0 0
    %1592 = vmatprep.subr.bf16.mxu0 0
    %1593 = vmatpush1.bf16.msra.mxu0 0
    %1594 = vmatprep.subr.bf16.mxu0 0
    %1595 = vmatpush1.bf16.msra.mxu0 0
    %1596 = vmatprep.subr.bf16.mxu0 0
    %1597 = vmatpush1.bf16.msra.mxu0 0
    %1598 = vmatprep.subr.bf16.mxu0 0
    %1599 = vmatpush1.bf16.msra.mxu0 0
    %1600 = vmatprep.subr.bf16.mxu0 %v1098
    %1601 = vmatpush1.bf16.msra.mxu0 %v1097
    %1602 = vmatprep.subr.bf16.mxu0 0
    %1603 = vmatpush2.bf16.msra.mxu0 0
    %1604 = vmatprep.subr.bf16.mxu0 0
    %1605 = vmatpush2.bf16.msra.mxu0 0
    %1606 = vmatprep.subr.bf16.mxu0 0
    %1607 = vmatpush2.bf16.msra.mxu0 0
    %1608 = vmatprep.subr.bf16.mxu0 0
    %1609 = vmatpush2.bf16.msra.mxu0 0
    %1610 = vmatprep.subr.bf16.mxu0 0
    %1611 = vmatpush2.bf16.msra.mxu0 0
    %1612 = vmatprep.subr.bf16.mxu0 0
    %1613 = vmatpush2.bf16.msra.mxu0 0
    %1614 = vmatprep.subr.bf16.mxu0 0
    %1615 = vmatpush2.bf16.msra.mxu0 0
    %1616 = vmatprep.subr.bf16.mxu0 0
    %1617 = vmatpush2.bf16.msra.mxu0 0
    %1618 = vmatprep.mubr.bf16.mxu0 0
    %1619 = vmatmul.mubr.bf16.gmra.mxu0 %v1297
    %v1620 = vpop.f32.mrf.mxu0
    %v1621 = vadd.f32 %v1580, %v1620
    %v1622 = vpop.f32.mrf.mxu0
    %v1623 = vadd.f32 %v1582, %v1622
    %v1624 = vpop.f32.mrf.mxu0
    %v1625 = vpop.f32.mrf.mxu0
    %1626 = vdwg.mxu0
    %v1627 = vmul.f32 %v1457, %v1457
    %v1628 = vmul.f32 %v1459, %v1459
    %v1629 = vmul.f32 %v1621, %v1621
    %v1630 = vmul.f32 %v1623, %v1623
    %v1631 = vmul.f32 %v1627, %v1457
    %v1632 = vmul.f32 %v1628, %v1459
    %v1633 = vmul.f32 %v1629, %v1621
    %v1634 = vmul.f32 %v1630, %v1623
    %v1635 = vmul.f32 %v1631, 0.044715
    %v1636 = vmul.f32 %v1632, 0.044715
    %v1637 = vmul.f32 %v1633, 0.044715
    %v1638 = vmul.f32 %v1634, 0.044715
    %v1639 = vadd.f32 %v1457, %v1635
    %v1640 = vadd.f32 %v1459, %v1636
    %v1641 = vadd.f32 %v1621, %v1637
    %v1642 = vadd.f32 %v1623, %v1638
    %v1643 = vmul.f32 %v1639, 0.7978846
    %v1644 = vmul.f32 %v1640, 0.7978846
    %v1645 = vmul.f32 %v1641, 0.7978846
    %v1646 = vmul.f32 %v1642, 0.7978846
    %v1647 = vmul.f32 %v1457, 0.5
    %v1648 = vmul.f32 %v1459, 0.5
    %v1649 = vmul.f32 %v1621, 0.5
    %v1650 = vmul.f32 %v1623, 0.5
    %v1651 = vtanh.pop %v1643
    %v1652 = vtanh.pop %v1644
    %v1653 = vtanh.pop %v1645
    %v1654 = vtanh.pop %v1646
    %v1655 = vadd.f32 %v1651, 1.0
    %v1656 = vadd.f32 %v1652, 1.0
    %v1657 = vadd.f32 %v1653, 1.0
    %v1658 = vadd.f32 %v1654, 1.0
    %v1659 = vmul.f32 %v1647, %v1655
    %v1660 = vmul.f32 %v1648, %v1656
    %v1661 = vmul.f32 %v1649, %v1657
    %v1662 = vmul.f32 %v1650, %v1658
    %v1663 = vpack.c.bf16 %v1659, %v1659
    %v1664 = vpack.c.bf16 %v1660, %v1660
    %v1665 = vpack.c.bf16 %v1661, %v1661
    %v1666 = vpack.c.bf16 %v1662, %v1662
    %v1667 = vld [vmem:[%s3] sm:$0xff]
    %v1668 = vld [vmem:[%s3 + $0x8] sm:$0xff]
    %v1669 = vld [vmem:[%s3 + $0x10] sm:$0xff]
    %v1670 = vld [vmem:[%s3 + $0x18] sm:$0xff]
    %v1671 = vld [vmem:[%s3 + $0x20] sm:$0xff]
    %v1672 = vld [vmem:[%s3 + $0x28] sm:$0xff]
    %v1673 = vld [vmem:[%s3 + $0x30] sm:$0xff]
    %v1674 = vld [vmem:[%s3 + $0x38] sm:$0xff]
    %v1675 = vld [vmem:[%s3 + $0x40] sm:$0xff]
    %v1676 = vld [vmem:[%s3 + $0x48] sm:$0xff]
    %v1677 = vld [vmem:[%s3 + $0x50] sm:$0xff]
    %v1678 = vld [vmem:[%s3 + $0x58] sm:$0xff]
    %v1679 = vld [vmem:[%s3 + $0x60] sm:$0xff]
    %v1680 = vld [vmem:[%s3 + $0x68] sm:$0xff]
    %v1681 = vld [vmem:[%s3 + $0x70] sm:$0xff]
    %v1682 = vld [vmem:[%s3 + $0x78] sm:$0xff]
    %v1683 = vld [vmem:[%s3 + $0x80] sm:$0xff]
    %v1684 = vld [vmem:[%s3 + $0x88] sm:$0xff]
    %v1685 = vld [vmem:[%s3 + $0x90] sm:$0xff]
    %v1686 = vld [vmem:[%s3 + $0x98] sm:$0xff]
    %v1687 = vld [vmem:[%s3 + $0xa0] sm:$0xff]
    %v1688 = vld [vmem:[%s3 + $0xa8] sm:$0xff]
    %v1689 = vld [vmem:[%s3 + $0xb0] sm:$0xff]
    %v1690 = vld [vmem:[%s3 + $0xb8] sm:$0xff]
    %v1691 = vld [vmem:[%s3 + $0xc0] sm:$0xff]
    %v1692 = vld [vmem:[%s3 + $0xc8] sm:$0xff]
    %v1693 = vld [vmem:[%s3 + $0xd0] sm:$0xff]
    %v1694 = vld [vmem:[%s3 + $0xd8] sm:$0xff]
    %v1695 = vld [vmem:[%s3 + $0xe0] sm:$0xff]
    %v1696 = vld [vmem:[%s3 + $0xe8] sm:$0xff]
    %v1697 = vld [vmem:[%s3 + $0xf0] sm:$0xff]
    %v1698 = vld [vmem:[%s3 + $0xf8] sm:$0xff]
    %v1699 = vld [vmem:[%s3 + $0x100] sm:$0xff]
    %v1700 = vld [vmem:[%s3 + $0x108] sm:$0xff]
    %v1701 = vld [vmem:[%s3 + $0x110] sm:$0xff]
    %v1702 = vld [vmem:[%s3 + $0x118] sm:$0xff]
    %v1703 = vld [vmem:[%s3 + $0x120] sm:$0xff]
    %v1704 = vld [vmem:[%s3 + $0x128] sm:$0xff]
    %v1705 = vld [vmem:[%s3 + $0x130] sm:$0xff]
    %v1706 = vld [vmem:[%s3 + $0x138] sm:$0xff]
    %v1707 = vld [vmem:[%s3 + $0x140] sm:$0xff]
    %v1708 = vld [vmem:[%s3 + $0x148] sm:$0xff]
    %v1709 = vld [vmem:[%s3 + $0x150] sm:$0xff]
    %v1710 = vld [vmem:[%s3 + $0x158] sm:$0xff]
    %v1711 = vld [vmem:[%s3 + $0x160] sm:$0xff]
    %v1712 = vld [vmem:[%s3 + $0x168] sm:$0xff]
    %v1713 = vld [vmem:[%s3 + $0x170] sm:$0xff]
    %v1714 = vld [vmem:[%s3 + $0x178] sm:$0xff]
    %v1715 = vld [vmem:[%s3 + $0x180] sm:$0xff]
    %v1716 = vld [vmem:[%s3 + $0x188] sm:$0xff]
    %v1717 = vld [vmem:[%s3 + $0x190] sm:$0xff]
    %v1718 = vld [vmem:[%s3 + $0x198] sm:$0xff]
    %v1719 = vld [vmem:[%s3 + $0x1a0] sm:$0xff]
    %v1720 = vld [vmem:[%s3 + $0x1a8] sm:$0xff]
    %v1721 = vld [vmem:[%s3 + $0x1b0] sm:$0xff]
    %v1722 = vld [vmem:[%s3 + $0x1b8] sm:$0xff]
    %v1723 = vld [vmem:[%s3 + $0x1c0] sm:$0xff]
    %v1724 = vld [vmem:[%s3 + $0x1c8] sm:$0xff]
    %v1725 = vld [vmem:[%s3 + $0x1d0] sm:$0xff]
    %v1726 = vld [vmem:[%s3 + $0x1d8] sm:$0xff]
    %v1727 = vld [vmem:[%s3 + $0x1e0] sm:$0xff]
    %v1728 = vld [vmem:[%s3 + $0x1e8] sm:$0xff]
    %v1729 = vld [vmem:[%s3 + $0x1f0] sm:$0xff]
    %v1730 = vld [vmem:[%s3 + $0x1f8] sm:$0xff]
    %v1731 = vld [vmem:[%s4] sm:$0x3]
    %v1733 = vlaneseq
    %v1734 = vshrl.u32 %v1733, 7
    %v1735 = vsub.s32 0, %v1734
    %v1736 = vrot.slane %v1731, %v1735
    %v1737 = vlaneseq
    %v1738 = vshrl.u32 %v1737, 7
    %v1739 = vsub.s32 1, %v1738
    %v1740 = vrot.slane %v1731, %v1739
    %v1807 = vunpack.c.l.b16 %v1667
    %v1808 = vunpack.c.h.b16 %v1667
    %v1809 = vunpack.c.l.b16 %v1668
    %v1810 = vunpack.c.h.b16 %v1668
    %v1811 = vunpack.c.l.b16 %v1669
    %v1812 = vunpack.c.h.b16 %v1669
    %v1813 = vunpack.c.l.b16 %v1670
    %v1814 = vunpack.c.h.b16 %v1670
    %v1815 = vunpack.c.l.b16 %v1671
    %v1816 = vunpack.c.h.b16 %v1671
    %v1817 = vunpack.c.l.b16 %v1672
    %v1818 = vunpack.c.h.b16 %v1672
    %v1819 = vunpack.c.l.b16 %v1673
    %v1820 = vunpack.c.h.b16 %v1673
    %v1821 = vunpack.c.l.b16 %v1674
    %v1822 = vunpack.c.h.b16 %v1674
    %v1823 = vunpack.c.l.b16 %v1675
    %v1824 = vunpack.c.h.b16 %v1675
    %v1825 = vunpack.c.l.b16 %v1676
    %v1826 = vunpack.c.h.b16 %v1676
    %v1827 = vunpack.c.l.b16 %v1677
    %v1828 = vunpack.c.h.b16 %v1677
    %v1829 = vunpack.c.l.b16 %v1678
    %v1830 = vunpack.c.h.b16 %v1678
    %v1831 = vunpack.c.l.b16 %v1679
    %v1832 = vunpack.c.h.b16 %v1679
    %v1833 = vunpack.c.l.b16 %v1680
    %v1834 = vunpack.c.h.b16 %v1680
    %v1835 = vunpack.c.l.b16 %v1681
    %v1836 = vunpack.c.h.b16 %v1681
    %v1837 = vunpack.c.l.b16 %v1682
    %v1838 = vunpack.c.h.b16 %v1682
    %v1839 = vunpack.c.l.b16 %v1683
    %v1840 = vunpack.c.h.b16 %v1683
    %v1841 = vunpack.c.l.b16 %v1684
    %v1842 = vunpack.c.h.b16 %v1684
    %v1843 = vunpack.c.l.b16 %v1685
    %v1844 = vunpack.c.h.b16 %v1685
    %v1845 = vunpack.c.l.b16 %v1686
    %v1846 = vunpack.c.h.b16 %v1686
    %v1847 = vunpack.c.l.b16 %v1687
    %v1848 = vunpack.c.h.b16 %v1687
    %v1849 = vunpack.c.l.b16 %v1688
    %v1850 = vunpack.c.h.b16 %v1688
    %v1851 = vunpack.c.l.b16 %v1689
    %v1852 = vunpack.c.h.b16 %v1689
    %v1853 = vunpack.c.l.b16 %v1690
    %v1854 = vunpack.c.h.b16 %v1690
    %v1855 = vunpack.c.l.b16 %v1691
    %v1856 = vunpack.c.h.b16 %v1691
    %v1857 = vunpack.c.l.b16 %v1692
    %v1858 = vunpack.c.h.b16 %v1692
    %v1859 = vunpack.c.l.b16 %v1693
    %v1860 = vunpack.c.h.b16 %v1693
    %v1861 = vunpack.c.l.b16 %v1694
    %v1862 = vunpack.c.h.b16 %v1694
    %v1863 = vunpack.c.l.b16 %v1695
    %v1864 = vunpack.c.h.b16 %v1695
    %v1865 = vunpack.c.l.b16 %v1696
    %v1866 = vunpack.c.h.b16 %v1696
    %v1867 = vunpack.c.l.b16 %v1697
    %v1868 = vunpack.c.h.b16 %v1697
    %v1869 = vunpack.c.l.b16 %v1698
    %v1870 = vunpack.c.h.b16 %v1698
    %v1871 = vunpack.c.l.b16 %v1699
    %v1872 = vunpack.c.h.b16 %v1699
    %v1873 = vunpack.c.l.b16 %v1700
    %v1874 = vunpack.c.h.b16 %v1700
    %v1875 = vunpack.c.l.b16 %v1701
    %v1876 = vunpack.c.h.b16 %v1701
    %v1877 = vunpack.c.l.b16 %v1702
    %v1878 = vunpack.c.h.b16 %v1702
    %v1879 = vunpack.c.l.b16 %v1703
    %v1880 = vunpack.c.h.b16 %v1703
    %v1881 = vunpack.c.l.b16 %v1704
    %v1882 = vunpack.c.h.b16 %v1704
    %v1883 = vunpack.c.l.b16 %v1705
    %v1884 = vunpack.c.h.b16 %v1705
    %v1885 = vunpack.c.l.b16 %v1706
    %v1886 = vunpack.c.h.b16 %v1706
    %v1887 = vunpack.c.l.b16 %v1707
    %v1888 = vunpack.c.h.b16 %v1707
    %v1889 = vunpack.c.l.b16 %v1708
    %v1890 = vunpack.c.h.b16 %v1708
    %v1891 = vunpack.c.l.b16 %v1709
    %v1892 = vunpack.c.h.b16 %v1709
    %v1893 = vunpack.c.l.b16 %v1710
    %v1894 = vunpack.c.h.b16 %v1710
    %v1895 = vunpack.c.l.b16 %v1711
    %v1896 = vunpack.c.h.b16 %v1711
    %v1897 = vunpack.c.l.b16 %v1712
    %v1898 = vunpack.c.h.b16 %v1712
    %v1899 = vunpack.c.l.b16 %v1713
    %v1900 = vunpack.c.h.b16 %v1713
    %v1901 = vunpack.c.l.b16 %v1714
    %v1902 = vunpack.c.h.b16 %v1714
    %v1903 = vunpack.c.l.b16 %v1715
    %v1904 = vunpack.c.h.b16 %v1715
    %v1905 = vunpack.c.l.b16 %v1716
    %v1906 = vunpack.c.h.b16 %v1716
    %v1907 = vunpack.c.l.b16 %v1717
    %v1908 = vunpack.c.h.b16 %v1717
    %v1909 = vunpack.c.l.b16 %v1718
    %v1910 = vunpack.c.h.b16 %v1718
    %v1911 = vunpack.c.l.b16 %v1719
    %v1912 = vunpack.c.h.b16 %v1719
    %v1913 = vunpack.c.l.b16 %v1720
    %v1914 = vunpack.c.h.b16 %v1720
    %v1915 = vunpack.c.l.b16 %v1721
    %v1916 = vunpack.c.h.b16 %v1721
    %v1917 = vunpack.c.l.b16 %v1722
    %v1918 = vunpack.c.h.b16 %v1722
    %v1919 = vunpack.c.l.b16 %v1723
    %v1920 = vunpack.c.h.b16 %v1723
    %v1921 = vunpack.c.l.b16 %v1724
    %v1922 = vunpack.c.h.b16 %v1724
    %v1923 = vunpack.c.l.b16 %v1725
    %v1924 = vunpack.c.h.b16 %v1725
    %v1925 = vunpack.c.l.b16 %v1726
    %v1926 = vunpack.c.h.b16 %v1726
    %v1927 = vunpack.c.l.b16 %v1727
    %v1928 = vunpack.c.h.b16 %v1727
    %v1929 = vunpack.c.l.b16 %v1728
    %v1930 = vunpack.c.h.b16 %v1728
    %v1931 = vunpack.c.l.b16 %v1729
    %v1932 = vunpack.c.h.b16 %v1729
    %v1933 = vunpack.c.l.b16 %v1730
    %v1934 = vunpack.c.h.b16 %v1730
    %v1935 = vpack.c.b16 %v1809, %v1807
    %v1936 = vpack.c.b16 %v1810, %v1808
    %v1937 = vpack.c.b16 %v1813, %v1811
    %v1938 = vpack.c.b16 %v1814, %v1812
    %v1939 = vpack.c.b16 %v1817, %v1815
    %v1940 = vpack.c.b16 %v1818, %v1816
    %v1941 = vpack.c.b16 %v1821, %v1819
    %v1942 = vpack.c.b16 %v1822, %v1820
    %v1943 = vpack.c.b16 %v1825, %v1823
    %v1944 = vpack.c.b16 %v1826, %v1824
    %v1945 = vpack.c.b16 %v1829, %v1827
    %v1946 = vpack.c.b16 %v1830, %v1828
    %v1947 = vpack.c.b16 %v1833, %v1831
    %v1948 = vpack.c.b16 %v1834, %v1832
    %v1949 = vpack.c.b16 %v1837, %v1835
    %v1950 = vpack.c.b16 %v1838, %v1836
    %v1951 = vpack.c.b16 %v1841, %v1839
    %v1952 = vpack.c.b16 %v1842, %v1840
    %v1953 = vpack.c.b16 %v1845, %v1843
    %v1954 = vpack.c.b16 %v1846, %v1844
    %v1955 = vpack.c.b16 %v1849, %v1847
    %v1956 = vpack.c.b16 %v1850, %v1848
    %v1957 = vpack.c.b16 %v1853, %v1851
    %v1958 = vpack.c.b16 %v1854, %v1852
    %v1959 = vpack.c.b16 %v1857, %v1855
    %v1960 = vpack.c.b16 %v1858, %v1856
    %v1961 = vpack.c.b16 %v1861, %v1859
    %v1962 = vpack.c.b16 %v1862, %v1860
    %v1963 = vpack.c.b16 %v1865, %v1863
    %v1964 = vpack.c.b16 %v1866, %v1864
    %v1965 = vpack.c.b16 %v1869, %v1867
    %v1966 = vpack.c.b16 %v1870, %v1868
    %v1967 = vpack.c.b16 %v1873, %v1871
    %v1968 = vpack.c.b16 %v1874, %v1872
    %v1969 = vpack.c.b16 %v1877, %v1875
    %v1970 = vpack.c.b16 %v1878, %v1876
    %v1971 = vpack.c.b16 %v1881, %v1879
    %v1972 = vpack.c.b16 %v1882, %v1880
    %v1973 = vpack.c.b16 %v1885, %v1883
    %v1974 = vpack.c.b16 %v1886, %v1884
    %v1975 = vpack.c.b16 %v1889, %v1887
    %v1976 = vpack.c.b16 %v1890, %v1888
    %v1977 = vpack.c.b16 %v1893, %v1891
    %v1978 = vpack.c.b16 %v1894, %v1892
    %v1979 = vpack.c.b16 %v1897, %v1895
    %v1980 = vpack.c.b16 %v1898, %v1896
    %v1981 = vpack.c.b16 %v1901, %v1899
    %v1982 = vpack.c.b16 %v1902, %v1900
    %v1983 = vpack.c.b16 %v1905, %v1903
    %v1984 = vpack.c.b16 %v1906, %v1904
    %v1985 = vpack.c.b16 %v1909, %v1907
    %v1986 = vpack.c.b16 %v1910, %v1908
    %v1987 = vpack.c.b16 %v1913, %v1911
    %v1988 = vpack.c.b16 %v1914, %v1912
    %v1989 = vpack.c.b16 %v1917, %v1915
    %v1990 = vpack.c.b16 %v1918, %v1916
    %v1991 = vpack.c.b16 %v1921, %v1919
    %v1992 = vpack.c.b16 %v1922, %v1920
    %v1993 = vpack.c.b16 %v1925, %v1923
    %v1994 = vpack.c.b16 %v1926, %v1924
    %v1995 = vpack.c.b16 %v1929, %v1927
    %v1996 = vpack.c.b16 %v1930, %v1928
    %v1997 = vpack.c.b16 %v1933, %v1931
    %v1998 = vpack.c.b16 %v1934, %v1932
    %2063 = vmatprep.subr.bf16.mxu0 %v1950
    %2064 = vmatpush1.bf16.msra.mxu0 %v1949
    %2065 = vmatprep.subr.bf16.mxu0 %v1948
    %2066 = vmatpush1.bf16.msra.mxu0 %v1947
    %2067 = vmatprep.subr.bf16.mxu0 %v1946
    %2068 = vmatpush1.bf16.msra.mxu0 %v1945
    %2069 = vmatprep.subr.bf16.mxu0 %v1944
    %2070 = vmatpush1.bf16.msra.mxu0 %v1943
    %2071 = vmatprep.subr.bf16.mxu0 %v1942
    %2072 = vmatpush1.bf16.msra.mxu0 %v1941
    %2073 = vmatprep.subr.bf16.mxu0 %v1940
    %2074 = vmatpush1.bf16.msra.mxu0 %v1939
    %2075 = vmatprep.subr.bf16.mxu0 %v1938
    %2076 = vmatpush1.bf16.msra.mxu0 %v1937
    %2077 = vmatprep.subr.bf16.mxu0 %v1936
    %2078 = vmatpush1.bf16.msra.mxu0 %v1935
    %2079 = vmatprep.subr.bf16.mxu0 %v1966
    %2080 = vmatpush2.bf16.msra.mxu0 %v1965
    %2081 = vmatprep.subr.bf16.mxu0 %v1964
    %2082 = vmatpush2.bf16.msra.mxu0 %v1963
    %2083 = vmatprep.subr.bf16.mxu0 %v1962
    %2084 = vmatpush2.bf16.msra.mxu0 %v1961
    %2085 = vmatprep.subr.bf16.mxu0 %v1960
    %2086 = vmatpush2.bf16.msra.mxu0 %v1959
    %2087 = vmatprep.subr.bf16.mxu0 %v1958
    %2088 = vmatpush2.bf16.msra.mxu0 %v1957
    %2089 = vmatprep.subr.bf16.mxu0 %v1956
    %2090 = vmatpush2.bf16.msra.mxu0 %v1955
    %2091 = vmatprep.subr.bf16.mxu0 %v1954
    %2092 = vmatpush2.bf16.msra.mxu0 %v1953
    %2093 = vmatprep.subr.bf16.mxu0 %v1952
    %2094 = vmatpush2.bf16.msra.mxu0 %v1951
    %2095 = vmatprep.mubr.bf16.mxu0 %v1664
    %2096 = vmatmul.mubr.bf16.gmra.mxu0 %v1663
    %v2097 = vpop.f32.mrf.mxu0
    %v2098 = vadd.f32 %v1736, %v2097
    %v2099 = vpop.f32.mrf.mxu0
    %v2100 = vadd.f32 %v1740, %v2099
    %v2101 = vpop.f32.mrf.mxu0
    %v2102 = vpop.f32.mrf.mxu0
    %2103 = vdwg.mxu0
    %2104 = vmatprep.subr.bf16.mxu0 %v1982
    %2105 = vmatpush1.bf16.msra.mxu0 %v1981
    %2106 = vmatprep.subr.bf16.mxu0 %v1980
    %2107 = vmatpush1.bf16.msra.mxu0 %v1979
    %2108 = vmatprep.subr.bf16.mxu0 %v1978
    %2109 = vmatpush1.bf16.msra.mxu0 %v1977
    %2110 = vmatprep.subr.bf16.mxu0 %v1976
    %2111 = vmatpush1.bf16.msra.mxu0 %v1975
    %2112 = vmatprep.subr.bf16.mxu0 %v1974
    %2113 = vmatpush1.bf16.msra.mxu0 %v1973
    %2114 = vmatprep.subr.bf16.mxu0 %v1972
    %2115 = vmatpush1.bf16.msra.mxu0 %v1971
    %2116 = vmatprep.subr.bf16.mxu0 %v1970
    %2117 = vmatpush1.bf16.msra.mxu0 %v1969
    %2118 = vmatprep.subr.bf16.mxu0 %v1968
    %2119 = vmatpush1.bf16.msra.mxu0 %v1967
    %2120 = vmatprep.subr.bf16.mxu0 %v1998
    %2121 = vmatpush2.bf16.msra.mxu0 %v1997
    %2122 = vmatprep.subr.bf16.mxu0 %v1996
    %2123 = vmatpush2.bf16.msra.mxu0 %v1995
    %2124 = vmatprep.subr.bf16.mxu0 %v1994
    %2125 = vmatpush2.bf16.msra.mxu0 %v1993
    %2126 = vmatprep.subr.bf16.mxu0 %v1992
    %2127 = vmatpush2.bf16.msra.mxu0 %v1991
    %2128 = vmatprep.subr.bf16.mxu0 %v1990
    %2129 = vmatpush2.bf16.msra.mxu0 %v1989
    %2130 = vmatprep.subr.bf16.mxu0 %v1988
    %2131 = vmatpush2.bf16.msra.mxu0 %v1987
    %2132 = vmatprep.subr.bf16.mxu0 %v1986
    %2133 = vmatpush2.bf16.msra.mxu0 %v1985
    %2134 = vmatprep.subr.bf16.mxu0 %v1984
    %2135 = vmatpush2.bf16.msra.mxu0 %v1983
    %2136 = vmatprep.mubr.bf16.mxu0 %v1666
    %2137 = vmatmul.mubr.bf16.gmra.mxu0 %v1665
    %v2138 = vpop.f32.mrf.mxu0
    %v2139 = vadd.f32 %v2098, %v2138
    %v2140 = vpop.f32.mrf.mxu0
    %v2141 = vadd.f32 %v2100, %v2140
    %v2142 = vpop.f32.mrf.mxu0
    %v2143 = vpop.f32.mrf.mxu0
    %2144 = vdwg.mxu0
    %v2145 = vmul.f32 %v2139, %v2139
    %v2146 = vmul.f32 %v2141, %v2141
    %v2147 = vmul.f32 %v2145, %v2139
    %v2148 = vmul.f32 %v2146, %v2141
    %v2149 = vmul.f32 %v2147, 0.044715
    %v2150 = vmul.f32 %v2148, 0.044715
    %v2151 = vadd.f32 %v2139, %v2149
    %v2152 = vadd.f32 %v2141, %v2150
    %v2153 = vmul.f32 %v2151, 0.7978846
    %v2154 = vmul.f32 %v2152, 0.7978846
    %v2155 = vmul.f32 %v2139, 0.5
    %v2156 = vmul.f32 %v2141, 0.5
    %v2157 = vtanh.pop %v2153
    %v2158 = vtanh.pop %v2154
    %v2159 = vadd.f32 %v2157, 1.0
    %v2160 = vadd.f32 %v2158, 1.0
    %v2161 = vmul.f32 %v2155, %v2159
    %v2162 = vmul.f32 %v2156, %v2160
    %v2163 = vpack.c.bf16 %v2161, %v2161
    %v2164 = vpack.c.bf16 %v2162, %v2162
    %v2165 = vld [vmem:[%s5] sm:$0xf]
    %v2166 = vld [vmem:[%s5 + $0x4] sm:$0xf]
    %v2167 = vld [vmem:[%s5 + $0x8] sm:$0xf]
    %v2168 = vld [vmem:[%s5 + $0xc] sm:$0xf]
    %v2169 = vld [vmem:[%s5 + $0x10] sm:$0xf]
    %v2170 = vld [vmem:[%s5 + $0x14] sm:$0xf]
    %v2171 = vld [vmem:[%s5 + $0x18] sm:$0xf]
    %v2172 = vld [vmem:[%s5 + $0x1c] sm:$0xf]
    %v2173 = vld [vmem:[%s5 + $0x20] sm:$0xf]
    %v2174 = vld [vmem:[%s5 + $0x24] sm:$0xf]
    %v2175 = vld [vmem:[%s5 + $0x28] sm:$0xf]
    %v2176 = vld [vmem:[%s5 + $0x2c] sm:$0xf]
    %v2177 = vld [vmem:[%s5 + $0x30] sm:$0xf]
    %v2178 = vld [vmem:[%s5 + $0x34] sm:$0xf]
    %v2179 = vld [vmem:[%s5 + $0x38] sm:$0xf]
    %v2180 = vld [vmem:[%s5 + $0x3c] sm:$0xf]
    %v2181 = vld [vmem:[%s5 + $0x40] sm:$0xf]
    %v2182 = vld [vmem:[%s5 + $0x44] sm:$0xf]
    %v2183 = vld [vmem:[%s5 + $0x48] sm:$0xf]
    %v2184 = vld [vmem:[%s5 + $0x4c] sm:$0xf]
    %v2185 = vld [vmem:[%s5 + $0x50] sm:$0xf]
    %v2186 = vld [vmem:[%s5 + $0x54] sm:$0xf]
    %v2187 = vld [vmem:[%s5 + $0x58] sm:$0xf]
    %v2188 = vld [vmem:[%s5 + $0x5c] sm:$0xf]
    %v2189 = vld [vmem:[%s5 + $0x60] sm:$0xf]
    %v2190 = vld [vmem:[%s5 + $0x64] sm:$0xf]
    %v2191 = vld [vmem:[%s5 + $0x68] sm:$0xf]
    %v2192 = vld [vmem:[%s5 + $0x6c] sm:$0xf]
    %v2193 = vld [vmem:[%s5 + $0x70] sm:$0xf]
    %v2194 = vld [vmem:[%s5 + $0x74] sm:$0xf]
    %v2195 = vld [vmem:[%s5 + $0x78] sm:$0xf]
    %v2196 = vld [vmem:[%s5 + $0x7c] sm:$0xf]
    %v2197 = vld [vmem:[%s6] sm:$0x1]
    %v2199 = vlaneseq
    %v2200 = vshrl.u32 %v2199, 7
    %v2201 = vsub.s32 0, %v2200
    %v2202 = vrot.slane %v2197, %v2201
    %v2236 = vunpack.c.l.b16 %v2165
    %v2237 = vunpack.c.l.b16 %v2166
    %v2238 = vunpack.c.l.b16 %v2167
    %v2239 = vunpack.c.l.b16 %v2168
    %v2240 = vunpack.c.l.b16 %v2169
    %v2241 = vunpack.c.l.b16 %v2170
    %v2242 = vunpack.c.l.b16 %v2171
    %v2243 = vunpack.c.l.b16 %v2172
    %v2244 = vunpack.c.l.b16 %v2173
    %v2245 = vunpack.c.l.b16 %v2174
    %v2246 = vunpack.c.l.b16 %v2175
    %v2247 = vunpack.c.l.b16 %v2176
    %v2248 = vunpack.c.l.b16 %v2177
    %v2249 = vunpack.c.l.b16 %v2178
    %v2250 = vunpack.c.l.b16 %v2179
    %v2251 = vunpack.c.l.b16 %v2180
    %v2252 = vunpack.c.l.b16 %v2181
    %v2253 = vunpack.c.l.b16 %v2182
    %v2254 = vunpack.c.l.b16 %v2183
    %v2255 = vunpack.c.l.b16 %v2184
    %v2256 = vunpack.c.l.b16 %v2185
    %v2257 = vunpack.c.l.b16 %v2186
    %v2258 = vunpack.c.l.b16 %v2187
    %v2259 = vunpack.c.l.b16 %v2188
    %v2260 = vunpack.c.l.b16 %v2189
    %v2261 = vunpack.c.l.b16 %v2190
    %v2262 = vunpack.c.l.b16 %v2191
    %v2263 = vunpack.c.l.b16 %v2192
    %v2264 = vunpack.c.l.b16 %v2193
    %v2265 = vunpack.c.l.b16 %v2194
    %v2266 = vunpack.c.l.b16 %v2195
    %v2267 = vunpack.c.l.b16 %v2196
    %v2268 = vpack.c.b16 %v2237, %v2236
    %v2269 = vpack.c.b16 %v2239, %v2238
    %v2270 = vpack.c.b16 %v2241, %v2240
    %v2271 = vpack.c.b16 %v2243, %v2242
    %v2272 = vpack.c.b16 %v2245, %v2244
    %v2273 = vpack.c.b16 %v2247, %v2246
    %v2274 = vpack.c.b16 %v2249, %v2248
    %v2275 = vpack.c.b16 %v2251, %v2250
    %v2276 = vpack.c.b16 %v2253, %v2252
    %v2277 = vpack.c.b16 %v2255, %v2254
    %v2278 = vpack.c.b16 %v2257, %v2256
    %v2279 = vpack.c.b16 %v2259, %v2258
    %v2280 = vpack.c.b16 %v2261, %v2260
    %v2281 = vpack.c.b16 %v2263, %v2262
    %v2282 = vpack.c.b16 %v2265, %v2264
    %v2283 = vpack.c.b16 %v2267, %v2266
    %2300 = vmatprep.subr.bf16.mxu0 0
    %2301 = vmatpush1.bf16.msra.mxu0 %v2275
    %2302 = vmatprep.subr.bf16.mxu0 0
    %2303 = vmatpush1.bf16.msra.mxu0 %v2274
    %2304 = vmatprep.subr.bf16.mxu0 0
    %2305 = vmatpush1.bf16.msra.mxu0 %v2273
    %2306 = vmatprep.subr.bf16.mxu0 0
    %2307 = vmatpush1.bf16.msra.mxu0 %v2272
    %2308 = vmatprep.subr.bf16.mxu0 0
    %2309 = vmatpush1.bf16.msra.mxu0 %v2271
    %2310 = vmatprep.subr.bf16.mxu0 0
    %2311 = vmatpush1.bf16.msra.mxu0 %v2270
    %2312 = vmatprep.subr.bf16.mxu0 0
    %2313 = vmatpush1.bf16.msra.mxu0 %v2269
    %2314 = vmatprep.subr.bf16.mxu0 0
    %2315 = vmatpush1.bf16.msra.mxu0 %v2268
    %2316 = vmatprep.subr.bf16.mxu0 0
    %2317 = vmatpush2.bf16.msra.mxu0 %v2283
    %2318 = vmatprep.subr.bf16.mxu0 0
    %2319 = vmatpush2.bf16.msra.mxu0 %v2282
    %2320 = vmatprep.subr.bf16.mxu0 0
    %2321 = vmatpush2.bf16.msra.mxu0 %v2281
    %2322 = vmatprep.subr.bf16.mxu0 0
    %2323 = vmatpush2.bf16.msra.mxu0 %v2280
    %2324 = vmatprep.subr.bf16.mxu0 0
    %2325 = vmatpush2.bf16.msra.mxu0 %v2279
    %2326 = vmatprep.subr.bf16.mxu0 0
    %2327 = vmatpush2.bf16.msra.mxu0 %v2278
    %2328 = vmatprep.subr.bf16.mxu0 0
    %2329 = vmatpush2.bf16.msra.mxu0 %v2277
    %2330 = vmatprep.subr.bf16.mxu0 0
    %2331 = vmatpush2.bf16.msra.mxu0 %v2276
    %2332 = vmatprep.mubr.bf16.mxu0 %v2164
    %2333 = vmatmul.mubr.bf16.gmra.mxu0 %v2163
    %v2334 = vpop.f32.mrf.mxu0
    %v2335 = vadd.f32 %v2202, %v2334
    %v2336 = vpop.f32.mrf.mxu0
    %v2337 = vpop.f32.mrf.mxu0
    %v2338 = vpop.f32.mrf.mxu0
    %2339 = vdwg.mxu0
    %v2340 = vmul.f32 %v2335, %v2335
    %v2341 = vmul.f32 %v2340, %v2335
    %v2342 = vmul.f32 %v2341, 0.044715
    %v2343 = vadd.f32 %v2335, %v2342
    %v2344 = vmul.f32 %v2343, 0.7978846
    %v2345 = vmul.f32 %v2335, 0.5
    %v2346 = vtanh.pop %v2344
    %v2347 = vadd.f32 %v2346, 1.0
    %v2348 = vmul.f32 %v2345, %v2347
    %v2349 = vpack.c.bf16 %v2348, %v2348
    %v2350 = vld [vmem:[%s7] sm:$0xf]
    %v2351 = vld [vmem:[%s7 + $0x4] sm:$0xf]
    %v2352 = vld [vmem:[%s7 + $0x8] sm:$0xf]
    %v2353 = vld [vmem:[%s7 + $0xc] sm:$0xf]
    %v2354 = vld [vmem:[%s7 + $0x10] sm:$0xf]
    %v2355 = vld [vmem:[%s7 + $0x14] sm:$0xf]
    %v2356 = vld [vmem:[%s7 + $0x18] sm:$0xf]
    %v2357 = vld [vmem:[%s7 + $0x1c] sm:$0xf]
    %v2358 = vld [vmem:[%s7 + $0x20] sm:$0xf]
    %v2359 = vld [vmem:[%s7 + $0x24] sm:$0xf]
    %v2360 = vld [vmem:[%s7 + $0x28] sm:$0xf]
    %v2361 = vld [vmem:[%s7 + $0x2c] sm:$0xf]
    %v2362 = vld [vmem:[%s7 + $0x30] sm:$0xf]
    %v2363 = vld [vmem:[%s7 + $0x34] sm:$0xf]
    %v2364 = vld [vmem:[%s7 + $0x38] sm:$0xf]
    %v2365 = vld [vmem:[%s7 + $0x3c] sm:$0xf]
    %v2366 = vld [vmem:[%s8] sm:$0x1]
    %v2368 = vlaneseq
    %v2369 = vshrl.u32 %v2368, 7
    %v2370 = vsub.s32 0, %v2369
    %v2371 = vrot.slane %v2366, %v2370
    %v2389 = vunpack.c.l.b16 %v2350
    %v2390 = vunpack.c.l.b16 %v2351
    %v2391 = vunpack.c.l.b16 %v2352
    %v2392 = vunpack.c.l.b16 %v2353
    %v2393 = vunpack.c.l.b16 %v2354
    %v2394 = vunpack.c.l.b16 %v2355
    %v2395 = vunpack.c.l.b16 %v2356
    %v2396 = vunpack.c.l.b16 %v2357
    %v2397 = vunpack.c.l.b16 %v2358
    %v2398 = vunpack.c.l.b16 %v2359
    %v2399 = vunpack.c.l.b16 %v2360
    %v2400 = vunpack.c.l.b16 %v2361
    %v2401 = vunpack.c.l.b16 %v2362
    %v2402 = vunpack.c.l.b16 %v2363
    %v2403 = vunpack.c.l.b16 %v2364
    %v2404 = vunpack.c.l.b16 %v2365
    %v2405 = vpack.c.b16 %v2390, %v2389
    %v2406 = vpack.c.b16 %v2392, %v2391
    %v2407 = vpack.c.b16 %v2394, %v2393
    %v2408 = vpack.c.b16 %v2396, %v2395
    %v2409 = vpack.c.b16 %v2398, %v2397
    %v2410 = vpack.c.b16 %v2400, %v2399
    %v2411 = vpack.c.b16 %v2402, %v2401
    %v2412 = vpack.c.b16 %v2404, %v2403
    %2421 = vmatprep.subr.bf16.mxu0 0
    %2422 = vmatpush1.bf16.msra.mxu0 %v2412
    %2423 = vmatprep.subr.bf16.mxu0 0
    %2424 = vmatpush1.bf16.msra.mxu0 %v2411
    %2425 = vmatprep.subr.bf16.mxu0 0
    %2426 = vmatpush1.bf16.msra.mxu0 %v2410
    %2427 = vmatprep.subr.bf16.mxu0 0
    %2428 = vmatpush1.bf16.msra.mxu0 %v2409
    %2429 = vmatprep.subr.bf16.mxu0 0
    %2430 = vmatpush1.bf16.msra.mxu0 %v2408
    %2431 = vmatprep.subr.bf16.mxu0 0
    %2432 = vmatpush1.bf16.msra.mxu0 %v2407
    %2433 = vmatprep.subr.bf16.mxu0 0
    %2434 = vmatpush1.bf16.msra.mxu0 %v2406
    %2435 = vmatprep.subr.bf16.mxu0 0
    %2436 = vmatpush1.bf16.msra.mxu0 %v2405
    %2437 = vmatprep.subr.bf16.mxu0 0
    %2438 = vmatpush2.bf16.msra.mxu0 0
    %2439 = vmatprep.subr.bf16.mxu0 0
    %2440 = vmatpush2.bf16.msra.mxu0 0
    %2441 = vmatprep.subr.bf16.mxu0 0
    %2442 = vmatpush2.bf16.msra.mxu0 0
    %2443 = vmatprep.subr.bf16.mxu0 0
    %2444 = vmatpush2.bf16.msra.mxu0 0
    %2445 = vmatprep.subr.bf16.mxu0 0
    %2446 = vmatpush2.bf16.msra.mxu0 0
    %2447 = vmatprep.subr.bf16.mxu0 0
    %2448 = vmatpush2.bf16.msra.mxu0 0
    %2449 = vmatprep.subr.bf16.mxu0 0
    %2450 = vmatpush2.bf16.msra.mxu0 0
    %2451 = vmatprep.subr.bf16.mxu0 0
    %2452 = vmatpush2.bf16.msra.mxu0 0
    %2453 = vmatprep.mubr.bf16.mxu0 0
    %2454 = vmatmul.mubr.bf16.gmra.mxu0 %v2349
    %v2455 = vpop.f32.mrf.mxu0
    %v2456 = vadd.f32 %v2371, %v2455
    %v2457 = vpop.f32.mrf.mxu0
    %v2458 = vpop.f32.mrf.mxu0
    %v2459 = vpop.f32.mrf.mxu0
    %2460 = vdwg.mxu0
    %v2461 = vmul.f32 %v2456, %v2456
    %v2462 = vmul.f32 %v2461, %v2456
    %v2463 = vmul.f32 %v2462, 0.044715
    %v2464 = vadd.f32 %v2456, %v2463
    %v2465 = vmul.f32 %v2464, 0.7978846
    %v2466 = vmul.f32 %v2456, 0.5
    %v2467 = vtanh.pop %v2465
    %v2468 = vadd.f32 %v2467, 1.0
    %v2469 = vmul.f32 %v2466, %v2468
    %v2470 = vpack.c.bf16 %v2469, %v2469
    %v2471 = vld [vmem:[%s9] sm:$0xf]
    %v2472 = vld [vmem:[%s9 + $0x4] sm:$0xf]
    %v2473 = vld [vmem:[%s9 + $0x8] sm:$0xf]
    %v2474 = vld [vmem:[%s9 + $0xc] sm:$0xf]
    %v2475 = vld [vmem:[%s9 + $0x10] sm:$0xf]
    %v2476 = vld [vmem:[%s9 + $0x14] sm:$0xf]
    %v2477 = vld [vmem:[%s9 + $0x18] sm:$0xf]
    %v2478 = vld [vmem:[%s9 + $0x1c] sm:$0xf]
    %v2479 = vld [vmem:[%s10] sm:$0x1]
    %v2481 = vlaneseq
    %v2482 = vshrl.u32 %v2481, 7
    %v2483 = vsub.s32 0, %v2482
    %v2484 = vrot.slane %v2479, %v2483
    %v2494 = vunpack.c.l.b16 %v2471
    %v2495 = vunpack.c.l.b16 %v2472
    %v2496 = vunpack.c.l.b16 %v2473
    %v2497 = vunpack.c.l.b16 %v2474
    %v2498 = vunpack.c.l.b16 %v2475
    %v2499 = vunpack.c.l.b16 %v2476
    %v2500 = vunpack.c.l.b16 %v2477
    %v2501 = vunpack.c.l.b16 %v2478
    %v2502 = vpack.c.b16 %v2495, %v2494
    %v2503 = vpack.c.b16 %v2497, %v2496
    %v2504 = vpack.c.b16 %v2499, %v2498
    %v2505 = vpack.c.b16 %v2501, %v2500
    %vm2510 = vcmask 523264
    %v2512 = vsel %vm2510, %v2470, 0
    %2514 = vmatprep.subr.bf16.mxu0 0
    %2515 = vmatpush1.bf16.msra.mxu0 0
    %2516 = vmatprep.subr.bf16.mxu0 0
    %2517 = vmatpush1.bf16.msra.mxu0 0
    %2518 = vmatprep.subr.bf16.mxu0 0
    %2519 = vmatpush1.bf16.msra.mxu0 0
    %2520 = vmatprep.subr.bf16.mxu0 0
    %2521 = vmatpush1.bf16.msra.mxu0 0
    %2522 = vmatprep.subr.bf16.mxu0 0
    %2523 = vmatpush1.bf16.msra.mxu0 %v2505
    %2524 = vmatprep.subr.bf16.mxu0 0
    %2525 = vmatpush1.bf16.msra.mxu0 %v2504
    %2526 = vmatprep.subr.bf16.mxu0 0
    %2527 = vmatpush1.bf16.msra.mxu0 %v2503
    %2528 = vmatprep.subr.bf16.mxu0 0
    %2529 = vmatpush1.bf16.msra.mxu0 %v2502
    %2530 = vmatprep.subr.bf16.mxu0 0
    %2531 = vmatpush2.bf16.msra.mxu0 0
    %2532 = vmatprep.subr.bf16.mxu0 0
    %2533 = vmatpush2.bf16.msra.mxu0 0
    %2534 = vmatprep.subr.bf16.mxu0 0
    %2535 = vmatpush2.bf16.msra.mxu0 0
    %2536 = vmatprep.subr.bf16.mxu0 0
    %2537 = vmatpush2.bf16.msra.mxu0 0
    %2538 = vmatprep.subr.bf16.mxu0 0
    %2539 = vmatpush2.bf16.msra.mxu0 0
    %2540 = vmatprep.subr.bf16.mxu0 0
    %2541 = vmatpush2.bf16.msra.mxu0 0
    %2542 = vmatprep.subr.bf16.mxu0 0
    %2543 = vmatpush2.bf16.msra.mxu0 0
    %2544 = vmatprep.subr.bf16.mxu0 0
    %2545 = vmatpush2.bf16.msra.mxu0 0
    %2546 = vmatprep.mubr.bf16.mxu0 0
    %2547 = vmatmul.mubr.bf16.gmra.mxu0 %v2512
    %v2548 = vpop.f32.mrf.mxu0
    %v2549 = vadd.f32 %v2484, %v2548
    %v2550 = vpop.f32.mrf.mxu0
    %v2551 = vpop.f32.mrf.mxu0
    %v2552 = vpop.f32.mrf.mxu0
    %2553 = vdwg.mxu0
    %v2554 = vmul.f32 %v2549, %v2549
    %v2555 = vmul.f32 %v2554, %v2549
    %v2556 = vmul.f32 %v2555, 0.044715
    %v2557 = vadd.f32 %v2549, %v2556
    %v2558 = vmul.f32 %v2557, 0.7978846
    %v2559 = vmul.f32 %v2549, 0.5
    %v2560 = vtanh.pop %v2558
    %v2561 = vadd.f32 %v2560, 1.0
    %v2562 = vmul.f32 %v2559, %v2561
    %v2563 = vpack.c.bf16 %v2562, %v2562
    %v2564 = vld [vmem:[%s11] sm:$0xf]
    %v2565 = vld [vmem:[%s11 + $0x4] sm:$0xf]
    %v2566 = vld [vmem:[%s11 + $0x8] sm:$0xf]
    %v2567 = vld [vmem:[%s11 + $0xc] sm:$0xf]
    %v2568 = vld [vmem:[%s12] sm:$0x1]
    %v2570 = vlaneseq
    %v2571 = vshrl.u32 %v2570, 7
    %v2572 = vsub.s32 0, %v2571
    %v2573 = vrot.slane %v2568, %v2572
    %v2579 = vunpack.c.l.b16 %v2564
    %v2580 = vunpack.c.l.b16 %v2565
    %v2581 = vunpack.c.l.b16 %v2566
    %v2582 = vunpack.c.l.b16 %v2567
    %v2583 = vpack.c.b16 %v2580, %v2579
    %v2584 = vpack.c.b16 %v2582, %v2581
    %vm2587 = vcmask 261120
    %v2589 = vsel %vm2587, %v2563, 0
    %2591 = vmatprep.subr.bf16.mxu0 0
    %2592 = vmatpush1.bf16.msra.mxu0 0
    %2593 = vmatprep.subr.bf16.mxu0 0
    %2594 = vmatpush1.bf16.msra.mxu0 0
    %2595 = vmatprep.subr.bf16.mxu0 0
    %2596 = vmatpush1.bf16.msra.mxu0 0
    %2597 = vmatprep.subr.bf16.mxu0 0
    %2598 = vmatpush1.bf16.msra.mxu0 0
    %2599 = vmatprep.subr.bf16.mxu0 0
    %2600 = vmatpush1.bf16.msra.mxu0 0
    %2601 = vmatprep.subr.bf16.mxu0 0
    %2602 = vmatpush1.bf16.msra.mxu0 0
    %2603 = vmatprep.subr.bf16.mxu0 0
    %2604 = vmatpush1.bf16.msra.mxu0 %v2584
    %2605 = vmatprep.subr.bf16.mxu0 0
    %2606 = vmatpush1.bf16.msra.mxu0 %v2583
    %2607 = vmatprep.subr.bf16.mxu0 0
    %2608 = vmatpush2.bf16.msra.mxu0 0
    %2609 = vmatprep.subr.bf16.mxu0 0
    %2610 = vmatpush2.bf16.msra.mxu0 0
    %2611 = vmatprep.subr.bf16.mxu0 0
    %2612 = vmatpush2.bf16.msra.mxu0 0
    %2613 = vmatprep.subr.bf16.mxu0 0
    %2614 = vmatpush2.bf16.msra.mxu0 0
    %2615 = vmatprep.subr.bf16.mxu0 0
    %2616 = vmatpush2.bf16.msra.mxu0 0
    %2617 = vmatprep.subr.bf16.mxu0 0
    %2618 = vmatpush2.bf16.msra.mxu0 0
    %2619 = vmatprep.subr.bf16.mxu0 0
    %2620 = vmatpush2.bf16.msra.mxu0 0
    %2621 = vmatprep.subr.bf16.mxu0 0
    %2622 = vmatpush2.bf16.msra.mxu0 0
    %2623 = vmatprep.mubr.bf16.mxu0 0
    %2624 = vmatmul.mubr.bf16.gmra.mxu0 %v2589
    %v2625 = vpop.f32.mrf.mxu0
    %v2626 = vadd.f32 %v2573, %v2625
    %v2627 = vpop.f32.mrf.mxu0
    %v2628 = vpop.f32.mrf.mxu0
    %v2629 = vpop.f32.mrf.mxu0
    %2630 = vdwg.mxu0
    %2631 = vst [vmem:[#allocation2] sm:$0x3] %v2626
    // Predicated region
    $region54: #{_forward.1} parent=1 // pred_check
      _
    $region55: #{_forward.1} parent=1 // pred_check_branch
      %2633 = sbr.rel (0) target = $region57
    $region56: #{_forward.1} parent=1 // pred_region
      %s2635 = ssub.s32 32, 32
      %2636 = vsyncadd [#allocation3], %s2635
      %s2638 = sshll.u32 [#allocation2], 4
      %s2639 = int_to_ptr.vmem [resolvable:$true] %s2638
      %2641 = dma.vmem_to_hbm [thread:$0]  %s2639, 32, %s13, [#allocation3]
    $region57: #{_forward.1} parent=1 // pred_fallthru
      _
    // Predicated region
    $region58: #{_forward.1} parent=1 // pred_check
      _
    $region59: #{_forward.1} parent=1 // pred_check_branch
      %2643 = sbr.rel (0) target = $region61
    $region60: #{_forward.1} parent=1 // pred_region
      %2644 = dma.done [#allocation3], 32
    $region61: #{_forward.1} parent=1 // pred_fallthru
      _
    %2645 = vsyncpa [#allocation3], 1

</llo_original>
